<compile_context>
chip_gen: v7x
topology: tpu7x:2x2x1
jax: 0.10.0
libtpu: 0.0.40
codegen_flags: <defaults>
</compile_context>

<pallas_src>
import math
import jax
import jax.numpy as jnp
from jax.experimental import pallas as pl
from jax.experimental.pallas import tpu as pltpu

# ---- module constants (DeepJ conventions) ----
OCTAVE = 12
NUM_OCTAVES = 4
NUM_NOTES = OCTAVE * NUM_OCTAVES          # 48
NOTE_UNITS = 3
OCTAVE_UNITS = 24
KSIZE = 2 * OCTAVE                        # 24
PAD_L = (2 * OCTAVE - 1) // 2             # 11
PAD_R = math.ceil((2 * OCTAVE - 1) / 2)   # 12
POS_EMB_DIM = 20

X_FLAT = NUM_NOTES * NOTE_UNITS           # 144  (kernel input width)
Y_FLAT = NUM_NOTES * OCTAVE_UNITS         # 1152 (kernel output width, 9*128 lanes)
BINS_W = 128                              # bins output lanes (first OCTAVE=12 used)


def _round_up(x, m):
    return ((x + m - 1) // m) * m


# ---------------- constant-weight construction (hoisted out of the forward) ----------------

def build_banded_weight(w):
    """Conv weight (KSIZE, Cin, Cout) -> banded matrix (144, 1152).

    W_big[m*Cin + c, n*Cout + d] = w[m - n + PAD_L, c, d] for valid taps, else 0.
    Folds the im2col AND the zero padding, so conv1d(x) == x_flat @ W_big exactly.
    """
    m = jnp.arange(NUM_NOTES)[:, None]                    # (48, 1)
    n = jnp.arange(NUM_NOTES)[None, :]                    # (1, 48)
    k = m - n + PAD_L                                     # (48, 48)
    valid = (k >= 0) & (k < KSIZE)
    wk = w[jnp.clip(k, 0, KSIZE - 1)]                     # (48, 48, Cin, Cout)
    wk = jnp.where(valid[:, :, None, None], wk, 0.0)
    return wk.transpose(0, 2, 1, 3).reshape(X_FLAT, Y_FLAT)


def build_bins_selector():
    """0/1 selector (1152, 128): column j sums channel-0 of every note with pitch class j."""
    col = jnp.arange(Y_FLAT)
    note = col // OCTAVE_UNITS
    chan = col % OCTAVE_UNITS
    pc = note % OCTAVE
    j = jnp.arange(BINS_W)
    sel = (chan[:, None] == 0) & (pc[:, None] == j[None, :])
    return sel.astype(jnp.float32)


def prepare_feature_params(params, compute_dtype=jnp.bfloat16):
    """Precompute kernel constants once (not per forward call)."""
    return {
        "w_big": build_banded_weight(params["w"]).astype(compute_dtype),
        "b_big": jnp.tile(params["b"], (1, NUM_NOTES)).astype(jnp.float32),  # (1, 1152)
        "sel": build_bins_selector().astype(compute_dtype),                  # (1152, 128)
        "pos_emb": params["pos_emb"].astype(jnp.float32),
        "class_emb": params["class_emb"].astype(jnp.float32),
        "compute_dtype": compute_dtype,
    }


# ---------------- Pallas kernel ----------------

def feat_kernel(x_ref, w_ref, b_ref, s_ref, notes_ref, bins_ref):
    """One lane-dense matmul + bias + tanh, plus fused pitch-class bins.

    x_ref: (tile, 144) f32         w_ref: (144, 1152) compute_dtype
    b_ref: (1, 1152) f32           s_ref: (1152, 128) compute_dtype
    notes_ref: (tile, 1152) compute_dtype   bins_ref: (tile, 128) compute_dtype
    """
    # In-kernel cast (VPU, hidden under the DMA) instead of an extra XLA HBM pass.
    x = x_ref[...].astype(w_ref.dtype)
    y = jnp.dot(x, w_ref[...], preferred_element_type=jnp.float32)
    y = y + b_ref[...]
    p = jnp.tanh(y)                                   # f32 tanh on the EUP
    notes_ref[...] = p.astype(notes_ref.dtype)
    # Fused bins: channel-0 columns selected + summed over octaves while the tanh
    # result is still resident in VMEM (avoids a strided HBM re-read by XLA).
    bins = jnp.dot(p.astype(s_ref.dtype), s_ref[...],
                   preferred_element_type=jnp.float32)
    bins_ref[...] = bins.astype(bins_ref.dtype)


def _vmem_limit_bytes(tile, cd_bytes):
    per_step = (tile * X_FLAT * 4            # x tile (f32 in)
                + tile * Y_FLAT * cd_bytes   # notes tile
                + tile * BINS_W * cd_bytes   # bins tile
                + X_FLAT * Y_FLAT * cd_bytes # banded weight
                + Y_FLAT * 4                 # bias
                + Y_FLAT * BINS_W * cd_bytes)  # selector
    need = 2 * per_step                      # everything double-buffered
    return min(max(int(1.25 * need) + (1 << 20), 16 << 20), 96 << 20)


def run_feature_conv(x_flat, w_big, b_big, sel, tile_bt, compute_dtype):
    BT = x_flat.shape[0]
    grid = pl.cdiv(BT, tile_bt)
    cd_bytes = jnp.dtype(compute_dtype).itemsize

    cost = pl.CostEstimate(
        flops=2 * BT * Y_FLAT * (X_FLAT + BINS_W),
        transcendentals=BT * Y_FLAT,
        bytes_accessed=(BT * X_FLAT * 4
                        + X_FLAT * Y_FLAT * cd_bytes
                        + Y_FLAT * 4
                        + Y_FLAT * BINS_W * cd_bytes
                        + BT * Y_FLAT * cd_bytes
                        + BT * BINS_W * cd_bytes),
    )

    return pl.pallas_call(
        feat_kernel,
        out_shape=(jax.ShapeDtypeStruct((BT, Y_FLAT), compute_dtype),
                   jax.ShapeDtypeStruct((BT, BINS_W), compute_dtype)),
        grid=(grid,),
        in_specs=[
            pl.BlockSpec((tile_bt, X_FLAT), lambda i: (i, 0)),
            pl.BlockSpec((X_FLAT, Y_FLAT), lambda i: (0, 0)),   # resident weight
            pl.BlockSpec((1, Y_FLAT), lambda i: (0, 0)),        # resident bias
            pl.BlockSpec((Y_FLAT, BINS_W), lambda i: (0, 0)),   # resident selector
        ],
        out_specs=(pl.BlockSpec((tile_bt, Y_FLAT), lambda i: (i, 0)),
                   pl.BlockSpec((tile_bt, BINS_W), lambda i: (i, 0))),
        compiler_params=pltpu.CompilerParams(
            dimension_semantics=("parallel",),
            vmem_limit_bytes=_vmem_limit_bytes(tile_bt, cd_bytes)),
        cost_estimate=cost,
    )(x_flat, w_big, b_big, sel)


def _choose_tile(BT, tile_bt):
    """Multiple of 8, capped by BT; ensure >= 2 grid steps (v7x: 2 TensorCores)."""
    tile = max(8, min(_round_up(tile_bt, 8), _round_up(BT, 8)))
    if BT > 8 and pl.cdiv(BT, tile) < 2:
        tile = _round_up(pl.cdiv(BT, 2), 8)
    return tile


def feature_generation_forward(notes_in, prepped, *, tile_bt=1024):
    """notes_in: (B, T, NUM_NOTES, NOTE_UNITS) f32 -> (B, T, NUM_NOTES, 57) f32."""
    B, T, NN, NU = notes_in.shape
    assert NN == NUM_NOTES and NU == NOTE_UNITS
    BT = B * T
    cd = prepped["compute_dtype"]

    # Flatten note/channel axes -> lane-dense (BT, 144); f32 straight into the kernel.
    x_flat = notes_in.reshape(BT, X_FLAT)
    tile = _choose_tile(BT, tile_bt)

    notes_flat, bins_pc = run_feature_conv(
        x_flat, prepped["w_big"], prepped["b_big"], prepped["sel"], tile, cd)

    notes4 = notes_flat.reshape(B, T, NUM_NOTES, OCTAVE_UNITS)

    # pos / pitch-class embeddings: constant indices -> broadcast of the tables.
    pos_emb = jnp.broadcast_to(prepped["pos_emb"][None, None],
                               (B, T, NUM_NOTES, POS_EMB_DIM))
    class_idx = jnp.arange(NUM_NOTES) % OCTAVE
    class_emb = jnp.broadcast_to(prepped["class_emb"][class_idx][None, None],
                                 (B, T, NUM_NOTES, OCTAVE))

    # Literal replication of torch's repeat(NUM_OCTAVES,1,1).view(B,T,48,1), including
    # its batch/time-interleaving behaviour (matches the spec as written).
    bins_bt = bins_pc[:, :OCTAVE].astype(jnp.float32).reshape(B, T, OCTAVE)
    bins = jnp.tile(bins_bt, (NUM_OCTAVES, 1, 1)).reshape(B, T, NUM_NOTES, 1)

    return jnp.concatenate(
        [notes4.astype(jnp.float32), pos_emb, class_emb, bins], axis=-1)


# ---------------- pure-JAX references (independent of the banded weight) ----------------

def _conv_pre_tanh_ref(x, w, b):
    """Per-tap conv reference. x: (BT, 48, 3) f32."""
    x_pad = jnp.pad(x, ((0, 0), (PAD_L, PAD_R), (0, 0)))
    cols = jnp.stack([x_pad[:, k:k + NUM_NOTES, :] for k in range(KSIZE)], axis=2)
    return jnp.einsum("bnkc,kcd->bnd", cols, w, precision="highest") + b[0]


def _forward_ref(notes_in, params):
    B, T = notes_in.shape[:2]
    x = notes_in.reshape(B * T, NUM_NOTES, NOTE_UNITS)
    ref_notes = jnp.tanh(_conv_pre_tanh_ref(x, params["w"], params["b"]))
    ref_notes = ref_notes.reshape(B, T, NUM_NOTES, OCTAVE_UNITS)
    pos = jnp.broadcast_to(params["pos_emb"][None, None],
                           (B, T, NUM_NOTES, POS_EMB_DIM))
    cls = jnp.broadcast_to(params["class_emb"][jnp.arange(NUM_NOTES) % OCTAVE][None, None],
                           (B, T, NUM_NOTES, OCTAVE))
    bins_bt = ref_notes[..., 0].reshape(B, T, NUM_OCTAVES, OCTAVE).sum(axis=2)
    bins = jnp.tile(bins_bt, (NUM_OCTAVES, 1, 1)).reshape(B, T, NUM_NOTES, 1)
    return jnp.concatenate([ref_notes, pos, cls, bins], axis=-1)


if __name__ == "__main__":
    key = jax.random.PRNGKey(0)
    kx, kw, kb, kp, kc = jax.random.split(key, 5)

    B, T = 4, 16                                  # BT = 64 -> 4 grid steps with tile_bt=16
    notes_in = jax.random.normal(kx, (B, T, NUM_NOTES, NOTE_UNITS), jnp.float32)

    params = {
        # torch Conv1d weight is (Cout, Cin, K); we store the (K, Cin, Cout) transpose.
        "w": 0.1 * jax.random.normal(kw, (KSIZE, NOTE_UNITS, OCTAVE_UNITS), jnp.float32),
        "b": 0.1 * jax.random.normal(kb, (1, OCTAVE_UNITS), jnp.float32),
        "pos_emb": jax.random.normal(kp, (NUM_NOTES, POS_EMB_DIM), jnp.float32),
        "class_emb": jax.random.normal(kc, (OCTAVE, OCTAVE), jnp.float32),
    }

    # 1) Banded-weight formulation sanity check (pure JAX f32, tight tolerance).
    x2d = notes_in.reshape(B * T, X_FLAT)
    y_banded = jnp.matmul(x2d, build_banded_weight(params["w"]), precision="highest")
    y_banded = y_banded.reshape(B * T, NUM_NOTES, OCTAVE_UNITS) + params["b"][0]
    y_taps = _conv_pre_tanh_ref(notes_in.reshape(B * T, NUM_NOTES, NOTE_UNITS),
                                params["w"], params["b"])
    assert jnp.allclose(y_banded, y_taps, atol=1e-4, rtol=1e-4)

    expected_feat = OCTAVE_UNITS + POS_EMB_DIM + OCTAVE + 1     # 57
    ref = _forward_ref(notes_in, params)

    # 2) Default fast path: bf16 compute + bf16 stores, f32 MXU accumulate.
    prepped = prepare_feature_params(params, compute_dtype=jnp.bfloat16)
    out = feature_generation_forward(notes_in, prepped, tile_bt=16)
    out = jax.block_until_ready(out)
    assert out.shape == (B, T, NUM_NOTES, expected_feat), out.shape
    # bf16 inputs/weights/stores with f32 accumulate -> relaxed tolerance.
    assert jnp.allclose(out, ref, atol=7e-2, rtol=7e-2), \
        float(jnp.max(jnp.abs(out - ref)))

    # 3) Strict f32 escape hatch: same kernel, compute_dtype=float32.
    prepped_f32 = prepare_feature_params(params, compute_dtype=jnp.float32)
    out32 = jax.block_until_ready(
        feature_generation_forward(notes_in, prepped_f32, tile_bt=16))
    assert jnp.allclose(out32, ref, atol=1e-3, rtol=1e-3), \
        float(jnp.max(jnp.abs(out32 - ref)))

    print("KERNEL_OK")
</pallas_src>

<mosaic_0001>
module attributes {stable_mosaic.version = 11 : i64} {
  func.func @feat_kernel(%arg0: i32, %arg1: memref<16x144xf32, #tpu.memory_space<vmem>>, %arg2: memref<144x1152xbf16, #tpu.memory_space<vmem>>, %arg3: memref<1x1152xf32, #tpu.memory_space<vmem>>, %arg4: memref<1152x128xbf16, #tpu.memory_space<vmem>>, %arg5: memref<16x1152xbf16, #tpu.memory_space<vmem>>, %arg6: memref<16x128xbf16, #tpu.memory_space<vmem>>) attributes {dimension_semantics = [#tpu.dimension_semantics<parallel>], iteration_bounds = array<i64: 4>, scalar_prefetch = 0 : i64, scratch_operands = 0 : i64, tpu.core_type = #tpu.core_type<tc>, window_params = [{transform_indices = @transform_0, window_bounds = array<i64: 16, 144>}, {pipeline_mode = #tpu.pipeline_mode<synchronous>, transform_indices = @transform_1, window_bounds = array<i64: 144, 1152>}, {pipeline_mode = #tpu.pipeline_mode<synchronous>, transform_indices = @transform_2, window_bounds = array<i64: 1, 1152>}, {pipeline_mode = #tpu.pipeline_mode<synchronous>, transform_indices = @transform_3, window_bounds = array<i64: 1152, 128>}, {transform_indices = @transform_4, window_bounds = array<i64: 16, 1152>}, {transform_indices = @transform_5, window_bounds = array<i64: 16, 128>}]} {
    %c0 = arith.constant 0 : index
    %c0_0 = arith.constant 0 : index
    %0 = vector.load %arg1[%c0, %c0_0] : memref<16x144xf32, #tpu.memory_space<vmem>>, vector<16x144xf32>
    %1 = arith.truncf %0 : vector<16x144xf32> to vector<16x144xbf16>
    %c0_1 = arith.constant 0 : index
    %c0_2 = arith.constant 0 : index
    %2 = vector.load %arg2[%c0_1, %c0_2] : memref<144x1152xbf16, #tpu.memory_space<vmem>>, vector<144x1152xbf16>
    %cst = arith.constant dense<0.000000e+00> : vector<16x1152xf32>
    %3 = tpu.matmul %1, %2, %cst {dimension_numbers = #tpu.dot_dimension_numbers<[1], [0], [0], [1], [0, 0, 1, 1], [], []>} : vector<16x144xbf16>, vector<144x1152xbf16>, vector<16x1152xf32> -> vector<16x1152xf32>
    %c0_3 = arith.constant 0 : index
    %c0_4 = arith.constant 0 : index
    %4 = vector.load %arg3[%c0_3, %c0_4] : memref<1x1152xf32, #tpu.memory_space<vmem>>, vector<1x1152xf32>
    %5 = vector.broadcast %4 : vector<1x1152xf32> to vector<16x1152xf32>
    %6 = arith.addf %3, %5 : vector<16x1152xf32>
    %7 = math.tanh %6 : vector<16x1152xf32>
    %8 = arith.truncf %7 : vector<16x1152xf32> to vector<16x1152xbf16>
    %c0_5 = arith.constant 0 : index
    %c0_6 = arith.constant 0 : index
    %9 = vector.load %arg5[%c0_5, %c0_6] : memref<16x1152xbf16, #tpu.memory_space<vmem>>, vector<16x1152xbf16>
    tpu.vector_store %arg5[%c0_5, %c0_6], %8 {strides = array<i32>} : memref<16x1152xbf16, #tpu.memory_space<vmem>>, vector<16x1152xbf16>,
    %10 = arith.truncf %7 : vector<16x1152xf32> to vector<16x1152xbf16>
    %c0_7 = arith.constant 0 : index
    %c0_8 = arith.constant 0 : index
    %11 = vector.load %arg4[%c0_7, %c0_8] : memref<1152x128xbf16, #tpu.memory_space<vmem>>, vector<1152x128xbf16>
    %cst_9 = arith.constant dense<0.000000e+00> : vector<16x128xf32>
    %12 = tpu.matmul %10, %11, %cst_9 {dimension_numbers = #tpu.dot_dimension_numbers<[1], [0], [0], [1], [0, 0, 1, 1], [], []>} : vector<16x1152xbf16>, vector<1152x128xbf16>, vector<16x128xf32> -> vector<16x128xf32>
    %13 = arith.truncf %12 : vector<16x128xf32> to vector<16x128xbf16>
    %c0_10 = arith.constant 0 : index
    %c0_11 = arith.constant 0 : index
    %14 = vector.load %arg6[%c0_10, %c0_11] : memref<16x128xbf16, #tpu.memory_space<vmem>>, vector<16x128xbf16>
    tpu.vector_store %arg6[%c0_10, %c0_11], %13 {strides = array<i32>} : memref<16x128xbf16, #tpu.memory_space<vmem>>, vector<16x128xbf16>,
    return
  }
  func.func @transform_0(%arg0: i32) -> (i32, i32) {
    %c0_i32 = arith.constant 0 : i32
    %c0_i32_0 = arith.constant 0 : i32
    return %arg0, %c0_i32 : i32, i32
  }
  func.func @transform_1(%arg0: i32) -> (i32, i32) {
    %c0_i32 = arith.constant 0 : i32
    %c0_i32_0 = arith.constant 0 : i32
    %c0_i32_1 = arith.constant 0 : i32
    return %c0_i32, %c0_i32_0 : i32, i32
  }
  func.func @transform_2(%arg0: i32) -> (i32, i32) {
    %c0_i32 = arith.constant 0 : i32
    %c0_i32_0 = arith.constant 0 : i32
    %c0_i32_1 = arith.constant 0 : i32
    return %c0_i32, %c0_i32_0 : i32, i32
  }
  func.func @transform_3(%arg0: i32) -> (i32, i32) {
    %c0_i32 = arith.constant 0 : i32
    %c0_i32_0 = arith.constant 0 : i32
    %c0_i32_1 = arith.constant 0 : i32
    return %c0_i32, %c0_i32_0 : i32, i32
  }
  func.func @transform_4(%arg0: i32) -> (i32, i32) {
    %c0_i32 = arith.constant 0 : i32
    %c0_i32_0 = arith.constant 0 : i32
    return %arg0, %c0_i32 : i32, i32
  }
  func.func @transform_5(%arg0: i32) -> (i32, i32) {
    %c0_i32 = arith.constant 0 : i32
    %c0_i32_0 = arith.constant 0 : i32
    return %arg0, %c0_i32 : i32, i32
  }
}

</mosaic_0001>

<llo_original>
// kernel: tpu_custom_call.1
$region0: #{tpu_custom_call.1}
  #allocation0 [shape = 'u32[]', space=smem, size = 0x4, offset = 0x4, fixed_abs, tag = 'smem constant byte address 0x4 - core index']
  #allocation1 [shape = 'u32[144,128]{1,0:T(1,128)}', space=vmem, size = 0x12000, scoped, tag = 'internal scratch']
  %s0 = inlined_call_operand.hbm [shape: f32[64,144], index: 0, kind: input, shape index: {}]
  %s1 = inlined_call_operand.hbm [shape: bf16[144,1152], index: 1, kind: input, shape index: {}]
  %s2 = inlined_call_operand.hbm [shape: f32[1,1152], index: 2, kind: input, shape index: {}]
  %s3 = inlined_call_operand.hbm [shape: bf16[1152,128], index: 3, kind: input, shape index: {}]
  %s4 = inlined_call_operand.hbm [shape: bf16[64,1152], index: 4, kind: output, shape index: {0}]
  %s5 = inlined_call_operand.hbm [shape: bf16[64,128], index: 5, kind: output, shape index: {1}]
  %6 = xla_tuple %s4, %s5
  %s7 = sld [smem:[#allocation0]]
  $region73: #{tpu_custom_call.1} parent=0
    _
  %s9 = ssub.s32 1, %s7
  %s10 = scalar_select 0, %s9, %s7
  $region1: #{tpu_custom_call.1} parent=0
    #allocation2 [shape = 'u8[32768]{0}', space=vmem, size = 0x8000, scoped, tag = 'input window, operand 0']
    #allocation3 [shape = 's32[2]{0}', space=sflag, size = 0x8, scoped, tag = 'scoped memory for tpu_custom_call.1']
    #allocation4 [shape = 's32[2]{0}', space=sflag, size = 0x8, scoped, tag = 'scoped memory for tpu_custom_call.1']
    #allocation5 [shape = 'u8[331776]{0}', space=vmem, size = 0x51000, scoped, tag = 'input window, operand 1, single buffered']
    #allocation6 [shape = 's32[1]{0}', space=sflag, size = 0x4, scoped, tag = 'scoped memory for tpu_custom_call.1']
    #allocation7 [shape = 'u8[4608]{0}', space=vmem, size = 0x1400, scoped, tag = 'input window, operand 2, single buffered']
    #allocation8 [shape = 'u8[294912]{0}', space=vmem, size = 0x48000, scoped, tag = 'input window, operand 3, single buffered']
    #allocation9 [shape = 's32[1]{0}', space=sflag, size = 0x4, scoped, tag = 'scoped memory for tpu_custom_call.1']
    #allocation10 [shape = 'u8[73728]{0}', space=vmem, size = 0x12000, scoped, tag = 'output window, operand 0']
    #allocation11 [shape = 'u8[8192]{0}', space=vmem, size = 0x2000, scoped, tag = 'output window, operand 1']
    #allocation12 [shape = 's32[2]{0}', space=sflag, size = 0x8, scoped, tag = 'scoped memory for tpu_custom_call.1']
    %11 = vsyncpa [#allocation3], 0
    %s12 = scalar_lea.sflag [#allocation3], 1
    %13 = vsyncpa %s12, 0
    %14 = vsyncpa [#allocation6], 0
    %15 = vsyncpa [#allocation9], 0
    %16 = vsyncpa [#allocation4], 0
    %s17 = scalar_lea.sflag [#allocation4], 1
    %18 = vsyncpa %s17, 0
    %19 = vsyncpa [#allocation12], 0
    %s20 = scalar_lea.sflag [#allocation12], 1
    %21 = vsyncpa %s20, 0
    loop: start=0, step=1, limit=6
    $region2: #{tpu_custom_call.1} parent=1 // loop_pre_header
      _
    $region3: #{tpu_custom_call.1} parent=1 // loop_header
      %s23 = sphi 0, %s27
      %p24 = scmp.ge.s32.totalorder %s23, 6
      %s33 = sphi 0, %s35
      %s36 = sphi 0, %s33
      %s37 = sphi 0, %s36
      %s53 = sphi 0, %s37
      %s57 = sphi 0, %s57
      %s59 = sphi 0, %s57
      %s60 = sphi 0, %s59
      %s74 = sphi 0, %s60
      %s78 = sphi 0, %s78
      %s80 = sphi 0, %s78
      %s81 = sphi 0, %s80
      %s95 = sphi 0, %s81
      %s99 = sphi 0, %s99
      %s101 = sphi 0, %s99
      %s102 = sphi 0, %s101
      %s116 = sphi 0, %s102
      %s122 = sphi 0, %s124
      %s125 = sphi 0, %s122
      %s126 = sphi 0, %s125
      %s142 = sphi 0, %s126
      %s148 = sphi 0, %s150
      %s151 = sphi 0, %s148
      %s152 = sphi 0, %s151
      %s168 = sphi 0, %s152
    $region4: #{tpu_custom_call.1} parent=1 // loop_header_branch
      %26 = sbr.rel (%p24) target = $region8
    $region5: #{tpu_custom_call.1} parent=1 // loop_body
      %s28 = ssub.s32 %s23, 1
      %s29 = ssub.s32 %s23, 2
      %s30 = sadd.s32 %s23, 1
      %s31 = ssub.s32 %s23, %s30
      %p32 = scmp.eq.s32.totalorder %s31, 0
      %s34 = sadd.s32 %s33, 1
      %s35 = scalar_select %p32, %s33, %s34
      %p38 = pneg %p32
      %p39 = scmp.eq.s32.totalorder %s23, 3
      %p40 = por %p38, %p39
      %p41 = scmp.ne.s32.totalorder %s33, %s36
      %p42 = scmp.eq.s32.totalorder %s23, 0
      %p43 = por %p41, %p42
      %p44 = scmp.ne.s32.totalorder %s33, %s36
      %p45 = scmp.eq.s32.totalorder %s28, 3
      %p46 = por %p44, %p45
      %p47 = scmp.ne.s32.totalorder %s36, %s37
      %p48 = scmp.eq.s32.totalorder %s28, 0
      %p49 = por %p47, %p48
      %p50 = scmp.ne.s32.totalorder %s36, %s37
      %p51 = scmp.eq.s32.totalorder %s29, 3
      %p52 = por %p50, %p51
      %p54 = scmp.ne.s32.totalorder %s37, %s53
      %p55 = scmp.eq.s32.totalorder %s29, 0
      %p56 = por %p54, %p55
      %s58 = sadd.s32 %s57, 1
      %p61 = scmp.eq.s32.totalorder %s23, 3
      %p62 = scmp.ne.s32.totalorder %s57, %s59
      %p63 = scmp.eq.s32.totalorder %s23, 0
      %p64 = por %p62, %p63
      %p65 = scmp.ne.s32.totalorder %s57, %s59
      %p66 = scmp.eq.s32.totalorder %s28, 3
      %p67 = por %p65, %p66
      %p68 = scmp.ne.s32.totalorder %s59, %s60
      %p69 = scmp.eq.s32.totalorder %s28, 0
      %p70 = por %p68, %p69
      %p71 = scmp.ne.s32.totalorder %s59, %s60
      %p72 = scmp.eq.s32.totalorder %s29, 3
      %p73 = por %p71, %p72
      %p75 = scmp.ne.s32.totalorder %s60, %s74
      %p76 = scmp.eq.s32.totalorder %s29, 0
      %p77 = por %p75, %p76
      %s79 = sadd.s32 %s78, 1
      %p82 = scmp.eq.s32.totalorder %s23, 3
      %p83 = scmp.ne.s32.totalorder %s78, %s80
      %p84 = scmp.eq.s32.totalorder %s23, 0
      %p85 = por %p83, %p84
      %p86 = scmp.ne.s32.totalorder %s78, %s80
      %p87 = scmp.eq.s32.totalorder %s28, 3
      %p88 = por %p86, %p87
      %p89 = scmp.ne.s32.totalorder %s80, %s81
      %p90 = scmp.eq.s32.totalorder %s28, 0
      %p91 = por %p89, %p90
      %p92 = scmp.ne.s32.totalorder %s80, %s81
      %p93 = scmp.eq.s32.totalorder %s29, 3
      %p94 = por %p92, %p93
      %p96 = scmp.ne.s32.totalorder %s81, %s95
      %p97 = scmp.eq.s32.totalorder %s29, 0
      %p98 = por %p96, %p97
      %s100 = sadd.s32 %s99, 1
      %p103 = scmp.eq.s32.totalorder %s23, 3
      %p104 = scmp.ne.s32.totalorder %s99, %s101
      %p105 = scmp.eq.s32.totalorder %s23, 0
      %p106 = por %p104, %p105
      %p107 = scmp.ne.s32.totalorder %s99, %s101
      %p108 = scmp.eq.s32.totalorder %s28, 3
      %p109 = por %p107, %p108
      %p110 = scmp.ne.s32.totalorder %s101, %s102
      %p111 = scmp.eq.s32.totalorder %s28, 0
      %p112 = por %p110, %p111
      %p113 = scmp.ne.s32.totalorder %s101, %s102
      %p114 = scmp.eq.s32.totalorder %s29, 3
      %p115 = por %p113, %p114
      %p117 = scmp.ne.s32.totalorder %s102, %s116
      %p118 = scmp.eq.s32.totalorder %s29, 0
      %p119 = por %p117, %p118
      %s120 = ssub.s32 %s23, %s30
      %p121 = scmp.eq.s32.totalorder %s120, 0
      %s123 = sadd.s32 %s122, 1
      %s124 = scalar_select %p121, %s122, %s123
      %p127 = pneg %p121
      %p128 = scmp.eq.s32.totalorder %s23, 3
      %p129 = por %p127, %p128
      %p130 = scmp.ne.s32.totalorder %s122, %s125
      %p131 = scmp.eq.s32.totalorder %s23, 0
      %p132 = por %p130, %p131
      %p133 = scmp.ne.s32.totalorder %s122, %s125
      %p134 = scmp.eq.s32.totalorder %s28, 3
      %p135 = por %p133, %p134
      %p136 = scmp.ne.s32.totalorder %s125, %s126
      %p137 = scmp.eq.s32.totalorder %s28, 0
      %p138 = por %p136, %p137
      %p139 = scmp.ne.s32.totalorder %s125, %s126
      %p140 = scmp.eq.s32.totalorder %s29, 3
      %p141 = por %p139, %p140
      %p143 = scmp.ne.s32.totalorder %s126, %s142
      %p144 = scmp.eq.s32.totalorder %s29, 0
      %p145 = por %p143, %p144
      %s146 = ssub.s32 %s23, %s30
      %p147 = scmp.eq.s32.totalorder %s146, 0
      %s149 = sadd.s32 %s148, 1
      %s150 = scalar_select %p147, %s148, %s149
      %p153 = pneg %p147
      %p154 = scmp.eq.s32.totalorder %s23, 3
      %p155 = por %p153, %p154
      %p156 = scmp.ne.s32.totalorder %s148, %s151
      %p157 = scmp.eq.s32.totalorder %s23, 0
      %p158 = por %p156, %p157
      %p159 = scmp.ne.s32.totalorder %s148, %s151
      %p160 = scmp.eq.s32.totalorder %s28, 3
      %p161 = por %p159, %p160
      %p162 = scmp.ne.s32.totalorder %s151, %s152
      %p163 = scmp.eq.s32.totalorder %s28, 0
      %p164 = por %p162, %p163
      %p165 = scmp.ne.s32.totalorder %s151, %s152
      %p166 = scmp.eq.s32.totalorder %s29, 3
      %p167 = por %p165, %p166
      %p169 = scmp.ne.s32.totalorder %s152, %s168
      %p170 = scmp.eq.s32.totalorder %s29, 0
      %p171 = por %p169, %p170
      %p172 = scmp.le.s32.totalorder 1, %s23
      %p173 = scmp.lt.s32.totalorder %s23, 5
      %p174 = pnand %p172, %p173
      %p175 = pneg %p174
      // Predicated region
      $region9: #{tpu_custom_call.1} parent=5 // pred_check
        _
      $region10: #{tpu_custom_call.1} parent=5 // pred_check_branch
        %177 = sbr.rel (%p174) target = $region12
      $region11: #{tpu_custom_call.1} parent=5 // pred_region
        %s178 = ssub.s32 %s23, 1
        // Predicated region
        $region13: #{tpu_custom_call.1} parent=11 // pred_check
          %p179 = pneg %p70
        $region14: #{tpu_custom_call.1} parent=11 // pred_check_branch
          %181 = sbr.rel (%p179) target = $region16
        $region15: #{tpu_custom_call.1} parent=11 // pred_region
          %s183 = ssub.s32 10368, 10368
          %184 = vsyncadd [#allocation6], %s183
          %s185 = sshll.u32 [#allocation5], 4
          %s186 = int_to_ptr.vmem [resolvable:$true] %s185
          %191 = dma.hbm_to_vmem [thread:$0]  %s1, 10368, %s186, [#allocation6], 576, 576, 36
        $region16: #{tpu_custom_call.1} parent=11 // pred_fallthru
          _
        // Predicated region
        $region17: #{tpu_custom_call.1} parent=11 // pred_check
          %p192 = pneg %p91
        $region18: #{tpu_custom_call.1} parent=11 // pred_check_branch
          %194 = sbr.rel (%p192) target = $region20
        $region19: #{tpu_custom_call.1} parent=11 // pred_region
          %s196 = ssub.s32 144, 144
          %197 = vsyncadd [#allocation6], %s196
          %s199 = sshll.u32 [#allocation7], 4
          %s200 = int_to_ptr.vmem [resolvable:$true] %s199
          %202 = dma.hbm_to_vmem [thread:$0]  %s2, 144, %s200, [#allocation6]
        $region20: #{tpu_custom_call.1} parent=11 // pred_fallthru
          _
        // Predicated region
        $region21: #{tpu_custom_call.1} parent=11 // pred_check
          %p203 = pneg %p112
        $region22: #{tpu_custom_call.1} parent=11 // pred_check_branch
          %205 = sbr.rel (%p203) target = $region24
        $region23: #{tpu_custom_call.1} parent=11 // pred_region
          %s207 = ssub.s32 9216, 9216
          %208 = vsyncadd [#allocation9], %s207
          %s209 = sshll.u32 [#allocation8], 4
          %s210 = int_to_ptr.vmem [resolvable:$true] %s209
          %215 = dma.hbm_to_vmem [thread:$0]  %s3, 9216, %s210, [#allocation9], 64, 64, 4
        $region24: #{tpu_custom_call.1} parent=11 // pred_fallthru
          _
      $region12: #{tpu_custom_call.1} parent=5 // pred_fallthru
        _
      %p216 = scmp.lt.s32.totalorder %s23, 4
      // Predicated region
      $region25: #{tpu_custom_call.1} parent=5 // pred_check
        %p217 = pneg %p216
      $region26: #{tpu_custom_call.1} parent=5 // pred_check_branch
        %219 = sbr.rel (%p217) target = $region28
      $region27: #{tpu_custom_call.1} parent=5 // pred_region
        // Predicated region
        $region29: #{tpu_custom_call.1} parent=27 // pred_check
          %p220 = pneg %p43
        $region30: #{tpu_custom_call.1} parent=27 // pred_check_branch
          %222 = sbr.rel (%p220) target = $region32
        $region31: #{tpu_custom_call.1} parent=27 // pred_region
          %s223 = sand.u32 %s33, 1
          %s224 = scalar_lea.sflag [#allocation3], %s223
          %s225 = sand.u32 %s33, 1
          %s226 = smul.addr %s225, 32
          %s227 = scalar_lea.vmem [#allocation2], %s226
          %s228 = smul.u32 2, %s23
          %s230 = ssub.s32 512, 512
          %231 = vsyncadd %s224, %s230
          %s232 = smul.addr %s228, 2
          %s233 = smul.addr %s232, 128
          %s234 = scalar_lea.hbm %s0, %s233
          %s235 = sshll.u32 %s227, 4
          %s236 = int_to_ptr.vmem [resolvable:$true] %s235
          %241 = dma.hbm_to_vmem [thread:$0]  %s234, 512, %s236, %s224, 256, 256, 16
        $region32: #{tpu_custom_call.1} parent=27 // pred_fallthru
          _
      $region28: #{tpu_custom_call.1} parent=5 // pred_fallthru
        _
      %p242 = scmp.le.s32.totalorder 1, %s23
      %p243 = scmp.lt.s32.totalorder %s23, 5
      %p244 = pnand %p242, %p243
      %p245 = pneg %p244
      // Predicated region
      $region33: #{tpu_custom_call.1} parent=5 // pred_check
        _
      $region34: #{tpu_custom_call.1} parent=5 // pred_check_branch
        %247 = sbr.rel (%p244) target = $region36
      $region35: #{tpu_custom_call.1} parent=5 // pred_region
        %s248 = ssub.s32 %s23, 1
        %s249 = sand.u32 %s36, 1
        %s250 = scalar_lea.sflag [#allocation3], %s249
        %s251 = sand.u32 %s36, 1
        %s252 = smul.addr %s251, 32
        %s253 = scalar_lea.vmem [#allocation2], %s252
        // Predicated region
        $region37: #{tpu_custom_call.1} parent=35 // pred_check
          %p254 = pneg %p49
        $region38: #{tpu_custom_call.1} parent=35 // pred_check_branch
          %256 = sbr.rel (%p254) target = $region40
        $region39: #{tpu_custom_call.1} parent=35 // pred_region
          %257 = dma.done %s250, 512
        $region40: #{tpu_custom_call.1} parent=35 // pred_fallthru
          _
        // Predicated region
        $region41: #{tpu_custom_call.1} parent=35 // pred_check
          %p258 = pneg %p70
        $region42: #{tpu_custom_call.1} parent=35 // pred_check_branch
          %260 = sbr.rel (%p258) target = $region44
        $region43: #{tpu_custom_call.1} parent=35 // pred_region
          %261 = dma.done [#allocation6], 10368
        $region44: #{tpu_custom_call.1} parent=35 // pred_fallthru
          _
        // Predicated region
        $region45: #{tpu_custom_call.1} parent=35 // pred_check
          %p262 = pneg %p91
        $region46: #{tpu_custom_call.1} parent=35 // pred_check_branch
          %264 = sbr.rel (%p262) target = $region48
        $region47: #{tpu_custom_call.1} parent=35 // pred_region
          %265 = dma.done [#allocation6], 144
        $region48: #{tpu_custom_call.1} parent=35 // pred_fallthru
          _
        // Predicated region
        $region49: #{tpu_custom_call.1} parent=35 // pred_check
          %p266 = pneg %p112
        $region50: #{tpu_custom_call.1} parent=35 // pred_check_branch
          %268 = sbr.rel (%p266) target = $region52
        $region51: #{tpu_custom_call.1} parent=35 // pred_region
          %269 = dma.done [#allocation9], 9216
        $region52: #{tpu_custom_call.1} parent=35 // pred_fallthru
          _
        %s270 = sand.u32 %s36, 1
        %s271 = scalar_lea.sflag [#allocation3], %s270
        %s272 = sand.u32 %s36, 1
        %s273 = smul.addr %s272, 32
        %s274 = scalar_lea.vmem [#allocation2], %s273
        %p275 = pneg %p49
        %p276 = pneg %p46
        %p277 = pneg %p70
        %p278 = pneg %p67
        %p279 = pneg %p91
        %p280 = pneg %p88
        %p281 = pneg %p112
        %p282 = pneg %p109
        %p283 = pneg %p138
        %p284 = pneg %p135
        %s285 = sand.u32 %s125, 1
        %s286 = scalar_lea.sflag [#allocation4], %s285
        %s287 = sand.u32 %s125, 1
        %s288 = smul.addr %s287, 72
        %s289 = scalar_lea.vmem [#allocation10], %s288
        %p290 = pneg %p164
        %p291 = pneg %p161
        %s292 = sand.u32 %s151, 1
        %s293 = scalar_lea.sflag [#allocation12], %s292
        %s294 = sand.u32 %s151, 1
        %s295 = smul.addr %s294, 8
        %s296 = scalar_lea.vmem [#allocation11], %s295
        %s297 = smul.u32 2, %s28
        %s298 = smul.u32 2, %s28
        %s299 = smul.u32 2, %s28
        %v301 = vld [vmem:[%s253] sm:$0xff]
        %v302 = vld [vmem:[%s253 + $0x8] sm:$0xff]
        %v303 = vld [vmem:[%s253 + $0x10] sm:$0xff]
        %v304 = vld [vmem:[%s253 + $0x18] sm:$0xff]
        %v305 = vpack.c.bf16 %v303, %v301
        %v306 = vpack.c.bf16 %v304, %v302
        %v307 = vld [vmem:[#allocation5] sm:$0xff]
        %v308 = vld [vmem:[#allocation5 + $0x8] sm:$0xff]
        %v309 = vld [vmem:[#allocation5 + $0x10] sm:$0xff]
        %v310 = vld [vmem:[#allocation5 + $0x18] sm:$0xff]
        %v311 = vld [vmem:[#allocation5 + $0x20] sm:$0xf]
        %v312 = vld [vmem:[#allocation5 + $0x24] sm:$0xff]
        %v313 = vld [vmem:[#allocation5 + $0x2c] sm:$0xff]
        %v314 = vld [vmem:[#allocation5 + $0x34] sm:$0xff]
        %v315 = vld [vmem:[#allocation5 + $0x3c] sm:$0xff]
        %v316 = vld [vmem:[#allocation5 + $0x44] sm:$0xf]
        %v317 = vld [vmem:[#allocation5 + $0x48] sm:$0xff]
        %v318 = vld [vmem:[#allocation5 + $0x50] sm:$0xff]
        %v319 = vld [vmem:[#allocation5 + $0x58] sm:$0xff]
        %v320 = vld [vmem:[#allocation5 + $0x60] sm:$0xff]
        %v321 = vld [vmem:[#allocation5 + $0x68] sm:$0xf]
        %v322 = vld [vmem:[#allocation5 + $0x6c] sm:$0xff]
        %v323 = vld [vmem:[#allocation5 + $0x74] sm:$0xff]
        %v324 = vld [vmem:[#allocation5 + $0x7c] sm:$0xff]
        %v325 = vld [vmem:[#allocation5 + $0x84] sm:$0xff]
        %v326 = vld [vmem:[#allocation5 + $0x8c] sm:$0xf]
        %v327 = vld [vmem:[#allocation5 + $0x90] sm:$0xff]
        %v328 = vld [vmem:[#allocation5 + $0x98] sm:$0xff]
        %v329 = vld [vmem:[#allocation5 + $0xa0] sm:$0xff]
        %v330 = vld [vmem:[#allocation5 + $0xa8] sm:$0xff]
        %v331 = vld [vmem:[#allocation5 + $0xb0] sm:$0xf]
        %v332 = vld [vmem:[#allocation5 + $0xb4] sm:$0xff]
        %v333 = vld [vmem:[#allocation5 + $0xbc] sm:$0xff]
        %v334 = vld [vmem:[#allocation5 + $0xc4] sm:$0xff]
        %v335 = vld [vmem:[#allocation5 + $0xcc] sm:$0xff]
        %v336 = vld [vmem:[#allocation5 + $0xd4] sm:$0xf]
        %v337 = vld [vmem:[#allocation5 + $0xd8] sm:$0xff]
        %v338 = vld [vmem:[#allocation5 + $0xe0] sm:$0xff]
        %v339 = vld [vmem:[#allocation5 + $0xe8] sm:$0xff]
        %v340 = vld [vmem:[#allocation5 + $0xf0] sm:$0xff]
        %v341 = vld [vmem:[#allocation5 + $0xf8] sm:$0xf]
        %v342 = vld [vmem:[#allocation5 + $0xfc] sm:$0xff]
        %v343 = vld [vmem:[#allocation5 + $0x104] sm:$0xff]
        %v344 = vld [vmem:[#allocation5 + $0x10c] sm:$0xff]
        %v345 = vld [vmem:[#allocation5 + $0x114] sm:$0xff]
        %v346 = vld [vmem:[#allocation5 + $0x11c] sm:$0xf]
        %v347 = vld [vmem:[#allocation5 + $0x120] sm:$0xff]
        %v348 = vld [vmem:[#allocation5 + $0x128] sm:$0xff]
        %v349 = vld [vmem:[#allocation5 + $0x130] sm:$0xff]
        %v350 = vld [vmem:[#allocation5 + $0x138] sm:$0xff]
        %v351 = vld [vmem:[#allocation5 + $0x140] sm:$0xf]
        %v352 = vld [vmem:[#allocation5 + $0x144] sm:$0xff]
        %v353 = vld [vmem:[#allocation5 + $0x14c] sm:$0xff]
        %v354 = vld [vmem:[#allocation5 + $0x154] sm:$0xff]
        %v355 = vld [vmem:[#allocation5 + $0x15c] sm:$0xff]
        %v356 = vld [vmem:[#allocation5 + $0x164] sm:$0xf]
        %v357 = vld [vmem:[#allocation5 + $0x168] sm:$0xff]
        %v358 = vld [vmem:[#allocation5 + $0x170] sm:$0xff]
        %v359 = vld [vmem:[#allocation5 + $0x178] sm:$0xff]
        %v360 = vld [vmem:[#allocation5 + $0x180] sm:$0xff]
        %v361 = vld [vmem:[#allocation5 + $0x188] sm:$0xf]
        %v362 = vld [vmem:[#allocation5 + $0x18c] sm:$0xff]
        %v363 = vld [vmem:[#allocation5 + $0x194] sm:$0xff]
        %v364 = vld [vmem:[#allocation5 + $0x19c] sm:$0xff]
        %v365 = vld [vmem:[#allocation5 + $0x1a4] sm:$0xff]
        %v366 = vld [vmem:[#allocation5 + $0x1ac] sm:$0xf]
        %v367 = vld [vmem:[#allocation5 + $0x1b0] sm:$0xff]
        %v368 = vld [vmem:[#allocation5 + $0x1b8] sm:$0xff]
        %v369 = vld [vmem:[#allocation5 + $0x1c0] sm:$0xff]
        %v370 = vld [vmem:[#allocation5 + $0x1c8] sm:$0xff]
        %v371 = vld [vmem:[#allocation5 + $0x1d0] sm:$0xf]
        %v372 = vld [vmem:[#allocation5 + $0x1d4] sm:$0xff]
        %v373 = vld [vmem:[#allocation5 + $0x1dc] sm:$0xff]
        %v374 = vld [vmem:[#allocation5 + $0x1e4] sm:$0xff]
        %v375 = vld [vmem:[#allocation5 + $0x1ec] sm:$0xff]
        %v376 = vld [vmem:[#allocation5 + $0x1f4] sm:$0xf]
        %v377 = vld [vmem:[#allocation5 + $0x1f8] sm:$0xff]
        %v378 = vld [vmem:[#allocation5 + $0x200] sm:$0xff]
        %v379 = vld [vmem:[#allocation5 + $0x208] sm:$0xff]
        %v380 = vld [vmem:[#allocation5 + $0x210] sm:$0xff]
        %v381 = vld [vmem:[#allocation5 + $0x218] sm:$0xf]
        %v382 = vld [vmem:[#allocation5 + $0x21c] sm:$0xff]
        %v383 = vld [vmem:[#allocation5 + $0x224] sm:$0xff]
        %v384 = vld [vmem:[#allocation5 + $0x22c] sm:$0xff]
        %v385 = vld [vmem:[#allocation5 + $0x234] sm:$0xff]
        %v386 = vld [vmem:[#allocation5 + $0x23c] sm:$0xf]
        %v387 = vld [vmem:[#allocation5 + $0x240] sm:$0xff]
        %v388 = vld [vmem:[#allocation5 + $0x248] sm:$0xff]
        %v389 = vld [vmem:[#allocation5 + $0x250] sm:$0xff]
        %v390 = vld [vmem:[#allocation5 + $0x258] sm:$0xff]
        %v391 = vld [vmem:[#allocation5 + $0x260] sm:$0xf]
        %v392 = vld [vmem:[#allocation5 + $0x264] sm:$0xff]
        %v393 = vld [vmem:[#allocation5 + $0x26c] sm:$0xff]
        %v394 = vld [vmem:[#allocation5 + $0x274] sm:$0xff]
        %v395 = vld [vmem:[#allocation5 + $0x27c] sm:$0xff]
        %v396 = vld [vmem:[#allocation5 + $0x284] sm:$0xf]
        %v397 = vld [vmem:[#allocation7] sm:$0xff]
        %v398 = vld [vmem:[#allocation7 + $0x8] sm:$0x1]
        %v401 = vlaneseq
        %v402 = vshrl.u32 %v401, 7
        %v403 = vsub.s32 0, %v402
        %v404 = vrot.slane %v397, %v403
        %v405 = vlaneseq
        %v406 = vshrl.u32 %v405, 7
        %v407 = vsub.s32 1, %v406
        %v408 = vrot.slane %v397, %v407
        %v409 = vlaneseq
        %v410 = vshrl.u32 %v409, 7
        %v411 = vsub.s32 2, %v410
        %v412 = vrot.slane %v397, %v411
        %v413 = vlaneseq
        %v414 = vshrl.u32 %v413, 7
        %v415 = vsub.s32 3, %v414
        %v416 = vrot.slane %v397, %v415
        %v417 = vlaneseq
        %v418 = vshrl.u32 %v417, 7
        %v419 = vsub.s32 4, %v418
        %v420 = vrot.slane %v397, %v419
        %v421 = vlaneseq
        %v422 = vshrl.u32 %v421, 7
        %v423 = vsub.s32 5, %v422
        %v424 = vrot.slane %v397, %v423
        %v425 = vlaneseq
        %v426 = vshrl.u32 %v425, 7
        %v427 = vsub.s32 6, %v426
        %v428 = vrot.slane %v397, %v427
        %v429 = vlaneseq
        %v430 = vshrl.u32 %v429, 7
        %v431 = vsub.s32 7, %v430
        %v432 = vrot.slane %v397, %v431
        %v433 = vlaneseq
        %v434 = vshrl.u32 %v433, 7
        %v435 = vsub.s32 0, %v434
        %v436 = vrot.slane %v398, %v435
        %v536 = vunpack.c.l.b16 %v307
        %v537 = vunpack.c.h.b16 %v307
        %v538 = vunpack.c.l.b16 %v308
        %v539 = vunpack.c.h.b16 %v308
        %v540 = vunpack.c.l.b16 %v309
        %v541 = vunpack.c.h.b16 %v309
        %v542 = vunpack.c.l.b16 %v310
        %v543 = vunpack.c.h.b16 %v310
        %v544 = vunpack.c.l.b16 %v311
        %v545 = vunpack.c.l.b16 %v312
        %v546 = vunpack.c.h.b16 %v312
        %v547 = vunpack.c.l.b16 %v313
        %v548 = vunpack.c.h.b16 %v313
        %v549 = vunpack.c.l.b16 %v314
        %v550 = vunpack.c.h.b16 %v314
        %v551 = vunpack.c.l.b16 %v315
        %v552 = vunpack.c.h.b16 %v315
        %v553 = vunpack.c.l.b16 %v316
        %v554 = vunpack.c.l.b16 %v317
        %v555 = vunpack.c.h.b16 %v317
        %v556 = vunpack.c.l.b16 %v318
        %v557 = vunpack.c.h.b16 %v318
        %v558 = vunpack.c.l.b16 %v319
        %v559 = vunpack.c.h.b16 %v319
        %v560 = vunpack.c.l.b16 %v320
        %v561 = vunpack.c.h.b16 %v320
        %v562 = vunpack.c.l.b16 %v321
        %v563 = vunpack.c.l.b16 %v322
        %v564 = vunpack.c.h.b16 %v322
        %v565 = vunpack.c.l.b16 %v323
        %v566 = vunpack.c.h.b16 %v323
        %v567 = vunpack.c.l.b16 %v324
        %v568 = vunpack.c.h.b16 %v324
        %v569 = vunpack.c.l.b16 %v325
        %v570 = vunpack.c.h.b16 %v325
        %v571 = vunpack.c.l.b16 %v326
        %v572 = vunpack.c.l.b16 %v327
        %v573 = vunpack.c.h.b16 %v327
        %v574 = vunpack.c.l.b16 %v328
        %v575 = vunpack.c.h.b16 %v328
        %v576 = vunpack.c.l.b16 %v329
        %v577 = vunpack.c.h.b16 %v329
        %v578 = vunpack.c.l.b16 %v330
        %v579 = vunpack.c.h.b16 %v330
        %v580 = vunpack.c.l.b16 %v331
        %v581 = vunpack.c.l.b16 %v332
        %v582 = vunpack.c.h.b16 %v332
        %v583 = vunpack.c.l.b16 %v333
        %v584 = vunpack.c.h.b16 %v333
        %v585 = vunpack.c.l.b16 %v334
        %v586 = vunpack.c.h.b16 %v334
        %v587 = vunpack.c.l.b16 %v335
        %v588 = vunpack.c.h.b16 %v335
        %v589 = vunpack.c.l.b16 %v336
        %v590 = vunpack.c.l.b16 %v337
        %v591 = vunpack.c.h.b16 %v337
        %v592 = vunpack.c.l.b16 %v338
        %v593 = vunpack.c.h.b16 %v338
        %v594 = vunpack.c.l.b16 %v339
        %v595 = vunpack.c.h.b16 %v339
        %v596 = vunpack.c.l.b16 %v340
        %v597 = vunpack.c.h.b16 %v340
        %v598 = vunpack.c.l.b16 %v341
        %v599 = vunpack.c.l.b16 %v342
        %v600 = vunpack.c.h.b16 %v342
        %v601 = vunpack.c.l.b16 %v343
        %v602 = vunpack.c.h.b16 %v343
        %v603 = vunpack.c.l.b16 %v344
        %v604 = vunpack.c.h.b16 %v344
        %v605 = vunpack.c.l.b16 %v345
        %v606 = vunpack.c.h.b16 %v345
        %v607 = vunpack.c.l.b16 %v346
        %v608 = vunpack.c.l.b16 %v347
        %v609 = vunpack.c.h.b16 %v347
        %v610 = vunpack.c.l.b16 %v348
        %v611 = vunpack.c.h.b16 %v348
        %v612 = vunpack.c.l.b16 %v349
        %v613 = vunpack.c.h.b16 %v349
        %v614 = vunpack.c.l.b16 %v350
        %v615 = vunpack.c.h.b16 %v350
        %v616 = vunpack.c.l.b16 %v351
        %v617 = vunpack.c.l.b16 %v352
        %v618 = vunpack.c.h.b16 %v352
        %v619 = vunpack.c.l.b16 %v353
        %v620 = vunpack.c.h.b16 %v353
        %v621 = vunpack.c.l.b16 %v354
        %v622 = vunpack.c.h.b16 %v354
        %v623 = vunpack.c.l.b16 %v355
        %v624 = vunpack.c.h.b16 %v355
        %v625 = vunpack.c.l.b16 %v356
        %v626 = vunpack.c.l.b16 %v357
        %v627 = vunpack.c.h.b16 %v357
        %v628 = vunpack.c.l.b16 %v358
        %v629 = vunpack.c.h.b16 %v358
        %v630 = vunpack.c.l.b16 %v359
        %v631 = vunpack.c.h.b16 %v359
        %v632 = vunpack.c.l.b16 %v360
        %v633 = vunpack.c.h.b16 %v360
        %v634 = vunpack.c.l.b16 %v361
        %v635 = vunpack.c.l.b16 %v362
        %v636 = vunpack.c.h.b16 %v362
        %v637 = vunpack.c.l.b16 %v363
        %v638 = vunpack.c.h.b16 %v363
        %v639 = vunpack.c.l.b16 %v364
        %v640 = vunpack.c.h.b16 %v364
        %v641 = vunpack.c.l.b16 %v365
        %v642 = vunpack.c.h.b16 %v365
        %v643 = vunpack.c.l.b16 %v366
        %v644 = vunpack.c.l.b16 %v367
        %v645 = vunpack.c.h.b16 %v367
        %v646 = vunpack.c.l.b16 %v368
        %v647 = vunpack.c.h.b16 %v368
        %v648 = vunpack.c.l.b16 %v369
        %v649 = vunpack.c.h.b16 %v369
        %v650 = vunpack.c.l.b16 %v370
        %v651 = vunpack.c.h.b16 %v370
        %v652 = vunpack.c.l.b16 %v371
        %v653 = vunpack.c.l.b16 %v372
        %v654 = vunpack.c.h.b16 %v372
        %v655 = vunpack.c.l.b16 %v373
        %v656 = vunpack.c.h.b16 %v373
        %v657 = vunpack.c.l.b16 %v374
        %v658 = vunpack.c.h.b16 %v374
        %v659 = vunpack.c.l.b16 %v375
        %v660 = vunpack.c.h.b16 %v375
        %v661 = vunpack.c.l.b16 %v376
        %v662 = vunpack.c.l.b16 %v377
        %v663 = vunpack.c.h.b16 %v377
        %v664 = vunpack.c.l.b16 %v378
        %v665 = vunpack.c.h.b16 %v378
        %v666 = vunpack.c.l.b16 %v379
        %v667 = vunpack.c.h.b16 %v379
        %v668 = vunpack.c.l.b16 %v380
        %v669 = vunpack.c.h.b16 %v380
        %v670 = vunpack.c.l.b16 %v381
        %v671 = vunpack.c.l.b16 %v382
        %v672 = vunpack.c.h.b16 %v382
        %v673 = vunpack.c.l.b16 %v383
        %v674 = vunpack.c.h.b16 %v383
        %v675 = vunpack.c.l.b16 %v384
        %v676 = vunpack.c.h.b16 %v384
        %v677 = vunpack.c.l.b16 %v385
        %v678 = vunpack.c.h.b16 %v385
        %v679 = vunpack.c.l.b16 %v386
        %v680 = vunpack.c.l.b16 %v387
        %v681 = vunpack.c.h.b16 %v387
        %v682 = vunpack.c.l.b16 %v388
        %v683 = vunpack.c.h.b16 %v388
        %v684 = vunpack.c.l.b16 %v389
        %v685 = vunpack.c.h.b16 %v389
        %v686 = vunpack.c.l.b16 %v390
        %v687 = vunpack.c.h.b16 %v390
        %v688 = vunpack.c.l.b16 %v391
        %v689 = vunpack.c.l.b16 %v392
        %v690 = vunpack.c.h.b16 %v392
        %v691 = vunpack.c.l.b16 %v393
        %v692 = vunpack.c.h.b16 %v393
        %v693 = vunpack.c.l.b16 %v394
        %v694 = vunpack.c.h.b16 %v394
        %v695 = vunpack.c.l.b16 %v395
        %v696 = vunpack.c.h.b16 %v395
        %v697 = vunpack.c.l.b16 %v396
        %v698 = vpack.c.b16 %v545, %v536
        %v699 = vpack.c.b16 %v546, %v537
        %v700 = vpack.c.b16 %v547, %v538
        %v701 = vpack.c.b16 %v548, %v539
        %v702 = vpack.c.b16 %v549, %v540
        %v703 = vpack.c.b16 %v550, %v541
        %v704 = vpack.c.b16 %v551, %v542
        %v705 = vpack.c.b16 %v552, %v543
        %v706 = vpack.c.b16 %v553, %v544
        %v707 = vpack.c.b16 %v563, %v554
        %v708 = vpack.c.b16 %v564, %v555
        %v709 = vpack.c.b16 %v565, %v556
        %v710 = vpack.c.b16 %v566, %v557
        %v711 = vpack.c.b16 %v567, %v558
        %v712 = vpack.c.b16 %v568, %v559
        %v713 = vpack.c.b16 %v569, %v560
        %v714 = vpack.c.b16 %v570, %v561
        %v715 = vpack.c.b16 %v571, %v562
        %v716 = vpack.c.b16 %v581, %v572
        %v717 = vpack.c.b16 %v582, %v573
        %v718 = vpack.c.b16 %v583, %v574
        %v719 = vpack.c.b16 %v584, %v575
        %v720 = vpack.c.b16 %v585, %v576
        %v721 = vpack.c.b16 %v586, %v577
        %v722 = vpack.c.b16 %v587, %v578
        %v723 = vpack.c.b16 %v588, %v579
        %v724 = vpack.c.b16 %v589, %v580
        %v725 = vpack.c.b16 %v599, %v590
        %v726 = vpack.c.b16 %v600, %v591
        %v727 = vpack.c.b16 %v601, %v592
        %v728 = vpack.c.b16 %v602, %v593
        %v729 = vpack.c.b16 %v603, %v594
        %v730 = vpack.c.b16 %v604, %v595
        %v731 = vpack.c.b16 %v605, %v596
        %v732 = vpack.c.b16 %v606, %v597
        %v733 = vpack.c.b16 %v607, %v598
        %v734 = vpack.c.b16 %v617, %v608
        %v735 = vpack.c.b16 %v618, %v609
        %v736 = vpack.c.b16 %v619, %v610
        %v737 = vpack.c.b16 %v620, %v611
        %v738 = vpack.c.b16 %v621, %v612
        %v739 = vpack.c.b16 %v622, %v613
        %v740 = vpack.c.b16 %v623, %v614
        %v741 = vpack.c.b16 %v624, %v615
        %v742 = vpack.c.b16 %v625, %v616
        %v743 = vpack.c.b16 %v635, %v626
        %v744 = vpack.c.b16 %v636, %v627
        %v745 = vpack.c.b16 %v637, %v628
        %v746 = vpack.c.b16 %v638, %v629
        %v747 = vpack.c.b16 %v639, %v630
        %v748 = vpack.c.b16 %v640, %v631
        %v749 = vpack.c.b16 %v641, %v632
        %v750 = vpack.c.b16 %v642, %v633
        %v751 = vpack.c.b16 %v643, %v634
        %v752 = vpack.c.b16 %v653, %v644
        %v753 = vpack.c.b16 %v654, %v645
        %v754 = vpack.c.b16 %v655, %v646
        %v755 = vpack.c.b16 %v656, %v647
        %v756 = vpack.c.b16 %v657, %v648
        %v757 = vpack.c.b16 %v658, %v649
        %v758 = vpack.c.b16 %v659, %v650
        %v759 = vpack.c.b16 %v660, %v651
        %v760 = vpack.c.b16 %v661, %v652
        %v761 = vpack.c.b16 %v671, %v662
        %v762 = vpack.c.b16 %v672, %v663
        %v763 = vpack.c.b16 %v673, %v664
        %v764 = vpack.c.b16 %v674, %v665
        %v765 = vpack.c.b16 %v675, %v666
        %v766 = vpack.c.b16 %v676, %v667
        %v767 = vpack.c.b16 %v677, %v668
        %v768 = vpack.c.b16 %v678, %v669
        %v769 = vpack.c.b16 %v679, %v670
        %v770 = vpack.c.b16 %v689, %v680
        %v771 = vpack.c.b16 %v690, %v681
        %v772 = vpack.c.b16 %v691, %v682
        %v773 = vpack.c.b16 %v692, %v683
        %v774 = vpack.c.b16 %v693, %v684
        %v775 = vpack.c.b16 %v694, %v685
        %v776 = vpack.c.b16 %v695, %v686
        %v777 = vpack.c.b16 %v696, %v687
        %v778 = vpack.c.b16 %v697, %v688
        %vm860 = vcmask 130048
        %v862 = vsel %vm860, %v306, 0
        %864 = vmatprep.subr.bf16.mxu0 %v699
        %865 = vmatpush1.bf16.msra.mxu0 %v698
        %866 = vmatprep.subr.bf16.mxu0 %v708
        %867 = vmatpush1.bf16.msra.mxu0 %v707
        %868 = vmatprep.subr.bf16.mxu0 %v717
        %869 = vmatpush1.bf16.msra.mxu0 %v716
        %870 = vmatprep.subr.bf16.mxu0 %v726
        %871 = vmatpush1.bf16.msra.mxu0 %v725
        %872 = vmatprep.subr.bf16.mxu0 %v735
        %873 = vmatpush1.bf16.msra.mxu0 %v734
        %874 = vmatprep.subr.bf16.mxu0 %v744
        %875 = vmatpush1.bf16.msra.mxu0 %v743
        %876 = vmatprep.subr.bf16.mxu0 %v753
        %877 = vmatpush1.bf16.msra.mxu0 %v752
        %878 = vmatprep.subr.bf16.mxu0 %v762
        %879 = vmatpush1.bf16.msra.mxu0 %v761
        %880 = vmatprep.subr.bf16.mxu0 %v771
        %881 = vmatpush1.bf16.msra.mxu0 %v770
        %882 = vmatprep.subr.bf16.mxu0 0
        %883 = vmatpush1.bf16.msra.mxu0 0
        %884 = vmatprep.subr.bf16.mxu0 0
        %885 = vmatpush1.bf16.msra.mxu0 0
        %886 = vmatprep.subr.bf16.mxu0 0
        %887 = vmatpush1.bf16.msra.mxu0 0
        %888 = vmatprep.subr.bf16.mxu0 0
        %889 = vmatpush1.bf16.msra.mxu0 0
        %890 = vmatprep.subr.bf16.mxu0 0
        %891 = vmatpush1.bf16.msra.mxu0 0
        %892 = vmatprep.subr.bf16.mxu0 0
        %893 = vmatpush1.bf16.msra.mxu0 0
        %894 = vmatprep.subr.bf16.mxu0 0
        %895 = vmatpush1.bf16.msra.mxu0 0
        %896 = vmatprep.mubr.bf16.mxu0 %v862
        %897 = vmatmul.mubr.bf16.gmra.mrb[0].mxu0 %v305
        %v898 = vpop.f32.mrb[0].mxu0
        %v899 = vadd.f32 %v404, %v898
        %v900 = vpop.f32.mrb[0].mxu0
        %v901 = vadd.f32 %v408, %v900
        %v902 = vpop.f32.mrb[0].mxu0
        %v903 = vadd.f32 %v404, %v902
        %v904 = vpop.f32.mrb[0].mxu0
        %v905 = vadd.f32 %v408, %v904
        %906 = vdwg.mxu0
        %907 = vmatprep.subr.bf16.mxu0 %v701
        %908 = vmatpush1.bf16.msra.mxu0 %v700
        %909 = vmatprep.subr.bf16.mxu0 %v710
        %910 = vmatpush1.bf16.msra.mxu0 %v709
        %911 = vmatprep.subr.bf16.mxu0 %v719
        %912 = vmatpush1.bf16.msra.mxu0 %v718
        %913 = vmatprep.subr.bf16.mxu0 %v728
        %914 = vmatpush1.bf16.msra.mxu0 %v727
        %915 = vmatprep.subr.bf16.mxu0 %v737
        %916 = vmatpush1.bf16.msra.mxu0 %v736
        %917 = vmatprep.subr.bf16.mxu0 %v746
        %918 = vmatpush1.bf16.msra.mxu0 %v745
        %919 = vmatprep.subr.bf16.mxu0 %v755
        %920 = vmatpush1.bf16.msra.mxu0 %v754
        %921 = vmatprep.subr.bf16.mxu0 %v764
        %922 = vmatpush1.bf16.msra.mxu0 %v763
        %923 = vmatprep.subr.bf16.mxu0 %v773
        %924 = vmatpush1.bf16.msra.mxu0 %v772
        %925 = vmatprep.subr.bf16.mxu0 0
        %926 = vmatpush1.bf16.msra.mxu0 0
        %927 = vmatprep.subr.bf16.mxu0 0
        %928 = vmatpush1.bf16.msra.mxu0 0
        %929 = vmatprep.subr.bf16.mxu0 0
        %930 = vmatpush1.bf16.msra.mxu0 0
        %931 = vmatprep.subr.bf16.mxu0 0
        %932 = vmatpush1.bf16.msra.mxu0 0
        %933 = vmatprep.subr.bf16.mxu0 0
        %934 = vmatpush1.bf16.msra.mxu0 0
        %935 = vmatprep.subr.bf16.mxu0 0
        %936 = vmatpush1.bf16.msra.mxu0 0
        %937 = vmatprep.subr.bf16.mxu0 0
        %938 = vmatpush1.bf16.msra.mxu0 0
        %939 = vmatprep.mubr.bf16.mxu0 %v862
        %940 = vmatmul.mubr.bf16.gmra.mrb[0].mxu0 %v305
        %v941 = vpop.f32.mrb[0].mxu0
        %v942 = vadd.f32 %v412, %v941
        %v943 = vpop.f32.mrb[0].mxu0
        %v944 = vadd.f32 %v416, %v943
        %v945 = vpop.f32.mrb[0].mxu0
        %v946 = vadd.f32 %v412, %v945
        %v947 = vpop.f32.mrb[0].mxu0
        %v948 = vadd.f32 %v416, %v947
        %949 = vdwg.mxu0
        %950 = vmatprep.subr.bf16.mxu0 %v703
        %951 = vmatpush1.bf16.msra.mxu0 %v702
        %952 = vmatprep.subr.bf16.mxu0 %v712
        %953 = vmatpush1.bf16.msra.mxu0 %v711
        %954 = vmatprep.subr.bf16.mxu0 %v721
        %955 = vmatpush1.bf16.msra.mxu0 %v720
        %956 = vmatprep.subr.bf16.mxu0 %v730
        %957 = vmatpush1.bf16.msra.mxu0 %v729
        %958 = vmatprep.subr.bf16.mxu0 %v739
        %959 = vmatpush1.bf16.msra.mxu0 %v738
        %960 = vmatprep.subr.bf16.mxu0 %v748
        %961 = vmatpush1.bf16.msra.mxu0 %v747
        %962 = vmatprep.subr.bf16.mxu0 %v757
        %963 = vmatpush1.bf16.msra.mxu0 %v756
        %964 = vmatprep.subr.bf16.mxu0 %v766
        %965 = vmatpush1.bf16.msra.mxu0 %v765
        %966 = vmatprep.subr.bf16.mxu0 %v775
        %967 = vmatpush1.bf16.msra.mxu0 %v774
        %968 = vmatprep.subr.bf16.mxu0 0
        %969 = vmatpush1.bf16.msra.mxu0 0
        %970 = vmatprep.subr.bf16.mxu0 0
        %971 = vmatpush1.bf16.msra.mxu0 0
        %972 = vmatprep.subr.bf16.mxu0 0
        %973 = vmatpush1.bf16.msra.mxu0 0
        %974 = vmatprep.subr.bf16.mxu0 0
        %975 = vmatpush1.bf16.msra.mxu0 0
        %976 = vmatprep.subr.bf16.mxu0 0
        %977 = vmatpush1.bf16.msra.mxu0 0
        %978 = vmatprep.subr.bf16.mxu0 0
        %979 = vmatpush1.bf16.msra.mxu0 0
        %980 = vmatprep.subr.bf16.mxu0 0
        %981 = vmatpush1.bf16.msra.mxu0 0
        %982 = vmatprep.mubr.bf16.mxu0 %v862
        %983 = vmatmul.mubr.bf16.gmra.mrb[0].mxu0 %v305
        %v984 = vpop.f32.mrb[0].mxu0
        %v985 = vadd.f32 %v420, %v984
        %v986 = vpop.f32.mrb[0].mxu0
        %v987 = vadd.f32 %v424, %v986
        %v988 = vpop.f32.mrb[0].mxu0
        %v989 = vadd.f32 %v420, %v988
        %v990 = vpop.f32.mrb[0].mxu0
        %v991 = vadd.f32 %v424, %v990
        %992 = vdwg.mxu0
        %993 = vmatprep.subr.bf16.mxu0 %v705
        %994 = vmatpush1.bf16.msra.mxu0 %v704
        %995 = vmatprep.subr.bf16.mxu0 %v714
        %996 = vmatpush1.bf16.msra.mxu0 %v713
        %997 = vmatprep.subr.bf16.mxu0 %v723
        %998 = vmatpush1.bf16.msra.mxu0 %v722
        %999 = vmatprep.subr.bf16.mxu0 %v732
        %1000 = vmatpush1.bf16.msra.mxu0 %v731
        %1001 = vmatprep.subr.bf16.mxu0 %v741
        %1002 = vmatpush1.bf16.msra.mxu0 %v740
        %1003 = vmatprep.subr.bf16.mxu0 %v750
        %1004 = vmatpush1.bf16.msra.mxu0 %v749
        %1005 = vmatprep.subr.bf16.mxu0 %v759
        %1006 = vmatpush1.bf16.msra.mxu0 %v758
        %1007 = vmatprep.subr.bf16.mxu0 %v768
        %1008 = vmatpush1.bf16.msra.mxu0 %v767
        %1009 = vmatprep.subr.bf16.mxu0 %v777
        %1010 = vmatpush1.bf16.msra.mxu0 %v776
        %1011 = vmatprep.subr.bf16.mxu0 0
        %1012 = vmatpush1.bf16.msra.mxu0 0
        %1013 = vmatprep.subr.bf16.mxu0 0
        %1014 = vmatpush1.bf16.msra.mxu0 0
        %1015 = vmatprep.subr.bf16.mxu0 0
        %1016 = vmatpush1.bf16.msra.mxu0 0
        %1017 = vmatprep.subr.bf16.mxu0 0
        %1018 = vmatpush1.bf16.msra.mxu0 0
        %1019 = vmatprep.subr.bf16.mxu0 0
        %1020 = vmatpush1.bf16.msra.mxu0 0
        %1021 = vmatprep.subr.bf16.mxu0 0
        %1022 = vmatpush1.bf16.msra.mxu0 0
        %1023 = vmatprep.subr.bf16.mxu0 0
        %1024 = vmatpush1.bf16.msra.mxu0 0
        %1025 = vmatprep.mubr.bf16.mxu0 %v862
        %1026 = vmatmul.mubr.bf16.gmra.mrb[0].mxu0 %v305
        %v1027 = vpop.f32.mrb[0].mxu0
        %v1028 = vadd.f32 %v428, %v1027
        %v1029 = vpop.f32.mrb[0].mxu0
        %v1030 = vadd.f32 %v432, %v1029
        %v1031 = vpop.f32.mrb[0].mxu0
        %v1032 = vadd.f32 %v428, %v1031
        %v1033 = vpop.f32.mrb[0].mxu0
        %v1034 = vadd.f32 %v432, %v1033
        %1035 = vdwg.mxu0
        %1036 = vmatprep.subr.bf16.mxu0 0
        %1037 = vmatpush1.bf16.msra.mxu0 %v706
        %1038 = vmatprep.subr.bf16.mxu0 0
        %1039 = vmatpush1.bf16.msra.mxu0 %v715
        %1040 = vmatprep.subr.bf16.mxu0 0
        %1041 = vmatpush1.bf16.msra.mxu0 %v724
        %1042 = vmatprep.subr.bf16.mxu0 0
        %1043 = vmatpush1.bf16.msra.mxu0 %v733
        %1044 = vmatprep.subr.bf16.mxu0 0
        %1045 = vmatpush1.bf16.msra.mxu0 %v742
        %1046 = vmatprep.subr.bf16.mxu0 0
        %1047 = vmatpush1.bf16.msra.mxu0 %v751
        %1048 = vmatprep.subr.bf16.mxu0 0
        %1049 = vmatpush1.bf16.msra.mxu0 %v760
        %1050 = vmatprep.subr.bf16.mxu0 0
        %1051 = vmatpush1.bf16.msra.mxu0 %v769
        %1052 = vmatprep.subr.bf16.mxu0 0
        %1053 = vmatpush1.bf16.msra.mxu0 %v778
        %1054 = vmatprep.subr.bf16.mxu0 0
        %1055 = vmatpush1.bf16.msra.mxu0 0
        %1056 = vmatprep.subr.bf16.mxu0 0
        %1057 = vmatpush1.bf16.msra.mxu0 0
        %1058 = vmatprep.subr.bf16.mxu0 0
        %1059 = vmatpush1.bf16.msra.mxu0 0
        %1060 = vmatprep.subr.bf16.mxu0 0
        %1061 = vmatpush1.bf16.msra.mxu0 0
        %1062 = vmatprep.subr.bf16.mxu0 0
        %1063 = vmatpush1.bf16.msra.mxu0 0
        %1064 = vmatprep.subr.bf16.mxu0 0
        %1065 = vmatpush1.bf16.msra.mxu0 0
        %1066 = vmatprep.subr.bf16.mxu0 0
        %1067 = vmatpush1.bf16.msra.mxu0 0
        %1068 = vmatprep.mubr.bf16.mxu0 %v862
        %1069 = vmatmul.mubr.bf16.gmra.mrb[0].mxu0 %v305
        %v1070 = vpop.f32.mrb[0].mxu0
        %v1071 = vadd.f32 %v436, %v1070
        %v1072 = vpop.f32.mrb[0].mxu0
        %v1073 = vpop.f32.mrb[0].mxu0
        %v1074 = vadd.f32 %v436, %v1073
        %v1075 = vpop.f32.mrb[0].mxu0
        %1076 = vdwg.mxu0
        %v1077 = vtanh.pop %v899
        %v1078 = vtanh.pop %v901
        %v1079 = vtanh.pop %v942
        %v1080 = vtanh.pop %v944
        %v1081 = vtanh.pop %v985
        %v1082 = vtanh.pop %v987
        %v1083 = vtanh.pop %v1028
        %v1084 = vtanh.pop %v1030
        %v1085 = vtanh.pop %v1071
        %v1086 = vtanh.pop %v903
        %v1087 = vtanh.pop %v905
        %v1088 = vtanh.pop %v946
        %v1089 = vtanh.pop %v948
        %v1090 = vtanh.pop %v989
        %v1091 = vtanh.pop %v991
        %v1092 = vtanh.pop %v1032
        %v1093 = vtanh.pop %v1034
        %v1094 = vtanh.pop %v1074
        %v1095 = vpack.c.bf16 %v1086, %v1077
        %v1096 = vpack.c.bf16 %v1087, %v1078
        %v1097 = vpack.c.bf16 %v1088, %v1079
        %v1098 = vpack.c.bf16 %v1089, %v1080
        %v1099 = vpack.c.bf16 %v1090, %v1081
        %v1100 = vpack.c.bf16 %v1091, %v1082
        %v1101 = vpack.c.bf16 %v1092, %v1083
        %v1102 = vpack.c.bf16 %v1093, %v1084
        %v1103 = vpack.c.bf16 %v1094, %v1085
        %v1113 = vunpack.c.l.b16 %v1095
        %v1114 = vunpack.c.l.b16 %v1096
        %v1115 = vunpack.c.l.b16 %v1097
        %v1116 = vunpack.c.l.b16 %v1098
        %v1117 = vunpack.c.l.b16 %v1099
        %v1118 = vunpack.c.l.b16 %v1100
        %v1119 = vunpack.c.l.b16 %v1101
        %v1120 = vunpack.c.l.b16 %v1102
        %v1121 = vunpack.c.l.b16 %v1103
        %v1122 = vunpack.c.h.b16 %v1095
        %v1123 = vunpack.c.h.b16 %v1096
        %v1124 = vunpack.c.h.b16 %v1097
        %v1125 = vunpack.c.h.b16 %v1098
        %v1126 = vunpack.c.h.b16 %v1099
        %v1127 = vunpack.c.h.b16 %v1100
        %v1128 = vunpack.c.h.b16 %v1101
        %v1129 = vunpack.c.h.b16 %v1102
        %v1130 = vunpack.c.h.b16 %v1103
        %v1131 = vpack.c.b16 %v1114, %v1113
        %v1132 = vpack.c.b16 %v1116, %v1115
        %v1133 = vpack.c.b16 %v1118, %v1117
        %v1134 = vpack.c.b16 %v1120, %v1119
        %v1135 = vpack.c.b16 %v1121, %v1121
        %v1136 = vpack.c.b16 %v1123, %v1122
        %v1137 = vpack.c.b16 %v1125, %v1124
        %v1138 = vpack.c.b16 %v1127, %v1126
        %v1139 = vpack.c.b16 %v1129, %v1128
        %v1140 = vpack.c.b16 %v1130, %v1130
        %1151 = vst [vmem:[%s289] sm:$0xff] %v1131
        %1152 = vst [vmem:[%s289 + $0x8] sm:$0xff] %v1132
        %1153 = vst [vmem:[%s289 + $0x10] sm:$0xff] %v1133
        %1154 = vst [vmem:[%s289 + $0x18] sm:$0xff] %v1134
        %1155 = vst [vmem:[%s289 + $0x20] sm:$0xf] %v1135
        %1156 = vst [vmem:[%s289 + $0x24] sm:$0xff] %v1136
        %1157 = vst [vmem:[%s289 + $0x2c] sm:$0xff] %v1137
        %1158 = vst [vmem:[%s289 + $0x34] sm:$0xff] %v1138
        %1159 = vst [vmem:[%s289 + $0x3c] sm:$0xff] %v1139
        %1160 = vst [vmem:[%s289 + $0x44] sm:$0xf] %v1140
        %v1161 = vld [vmem:[#allocation8] sm:$0xf]
        %v1162 = vld [vmem:[#allocation8 + $0x4] sm:$0xf]
        %v1163 = vld [vmem:[#allocation8 + $0x8] sm:$0xf]
        %v1164 = vld [vmem:[#allocation8 + $0xc] sm:$0xf]
        %v1165 = vld [vmem:[#allocation8 + $0x10] sm:$0xf]
        %v1166 = vld [vmem:[#allocation8 + $0x14] sm:$0xf]
        %v1167 = vld [vmem:[#allocation8 + $0x18] sm:$0xf]
        %v1168 = vld [vmem:[#allocation8 + $0x1c] sm:$0xf]
        %v1169 = vld [vmem:[#allocation8 + $0x20] sm:$0xf]
        %v1170 = vld [vmem:[#allocation8 + $0x24] sm:$0xf]
        %v1171 = vld [vmem:[#allocation8 + $0x28] sm:$0xf]
        %v1172 = vld [vmem:[#allocation8 + $0x2c] sm:$0xf]
        %v1173 = vld [vmem:[#allocation8 + $0x30] sm:$0xf]
        %v1174 = vld [vmem:[#allocation8 + $0x34] sm:$0xf]
        %v1175 = vld [vmem:[#allocation8 + $0x38] sm:$0xf]
        %v1176 = vld [vmem:[#allocation8 + $0x3c] sm:$0xf]
        %v1177 = vld [vmem:[#allocation8 + $0x40] sm:$0xf]
        %v1178 = vld [vmem:[#allocation8 + $0x44] sm:$0xf]
        %v1179 = vld [vmem:[#allocation8 + $0x48] sm:$0xf]
        %v1180 = vld [vmem:[#allocation8 + $0x4c] sm:$0xf]
        %v1181 = vld [vmem:[#allocation8 + $0x50] sm:$0xf]
        %v1182 = vld [vmem:[#allocation8 + $0x54] sm:$0xf]
        %v1183 = vld [vmem:[#allocation8 + $0x58] sm:$0xf]
        %v1184 = vld [vmem:[#allocation8 + $0x5c] sm:$0xf]
        %v1185 = vld [vmem:[#allocation8 + $0x60] sm:$0xf]
        %v1186 = vld [vmem:[#allocation8 + $0x64] sm:$0xf]
        %v1187 = vld [vmem:[#allocation8 + $0x68] sm:$0xf]
        %v1188 = vld [vmem:[#allocation8 + $0x6c] sm:$0xf]
        %v1189 = vld [vmem:[#allocation8 + $0x70] sm:$0xf]
        %v1190 = vld [vmem:[#allocation8 + $0x74] sm:$0xf]
        %v1191 = vld [vmem:[#allocation8 + $0x78] sm:$0xf]
        %v1192 = vld [vmem:[#allocation8 + $0x7c] sm:$0xf]
        %v1193 = vld [vmem:[#allocation8 + $0x80] sm:$0xf]
        %v1194 = vld [vmem:[#allocation8 + $0x84] sm:$0xf]
        %v1195 = vld [vmem:[#allocation8 + $0x88] sm:$0xf]
        %v1196 = vld [vmem:[#allocation8 + $0x8c] sm:$0xf]
        %v1197 = vld [vmem:[#allocation8 + $0x90] sm:$0xf]
        %v1198 = vld [vmem:[#allocation8 + $0x94] sm:$0xf]
        %v1199 = vld [vmem:[#allocation8 + $0x98] sm:$0xf]
        %v1200 = vld [vmem:[#allocation8 + $0x9c] sm:$0xf]
        %v1201 = vld [vmem:[#allocation8 + $0xa0] sm:$0xf]
        %v1202 = vld [vmem:[#allocation8 + $0xa4] sm:$0xf]
        %v1203 = vld [vmem:[#allocation8 + $0xa8] sm:$0xf]
        %v1204 = vld [vmem:[#allocation8 + $0xac] sm:$0xf]
        %v1205 = vld [vmem:[#allocation8 + $0xb0] sm:$0xf]
        %v1206 = vld [vmem:[#allocation8 + $0xb4] sm:$0xf]
        %v1207 = vld [vmem:[#allocation8 + $0xb8] sm:$0xf]
        %v1208 = vld [vmem:[#allocation8 + $0xbc] sm:$0xf]
        %v1209 = vld [vmem:[#allocation8 + $0xc0] sm:$0xf]
        %v1210 = vld [vmem:[#allocation8 + $0xc4] sm:$0xf]
        %v1211 = vld [vmem:[#allocation8 + $0xc8] sm:$0xf]
        %v1212 = vld [vmem:[#allocation8 + $0xcc] sm:$0xf]
        %v1213 = vld [vmem:[#allocation8 + $0xd0] sm:$0xf]
        %v1214 = vld [vmem:[#allocation8 + $0xd4] sm:$0xf]
        %v1215 = vld [vmem:[#allocation8 + $0xd8] sm:$0xf]
        %v1216 = vld [vmem:[#allocation8 + $0xdc] sm:$0xf]
        %v1217 = vld [vmem:[#allocation8 + $0xe0] sm:$0xf]
        %v1218 = vld [vmem:[#allocation8 + $0xe4] sm:$0xf]
        %v1219 = vld [vmem:[#allocation8 + $0xe8] sm:$0xf]
        %v1220 = vld [vmem:[#allocation8 + $0xec] sm:$0xf]
        %v1221 = vld [vmem:[#allocation8 + $0xf0] sm:$0xf]
        %v1222 = vld [vmem:[#allocation8 + $0xf4] sm:$0xf]
        %v1223 = vld [vmem:[#allocation8 + $0xf8] sm:$0xf]
        %v1224 = vld [vmem:[#allocation8 + $0xfc] sm:$0xf]
        %v1225 = vld [vmem:[#allocation8 + $0x100] sm:$0xf]
        %v1226 = vld [vmem:[#allocation8 + $0x104] sm:$0xf]
        %v1227 = vld [vmem:[#allocation8 + $0x108] sm:$0xf]
        %v1228 = vld [vmem:[#allocation8 + $0x10c] sm:$0xf]
        %v1229 = vld [vmem:[#allocation8 + $0x110] sm:$0xf]
        %v1230 = vld [vmem:[#allocation8 + $0x114] sm:$0xf]
        %v1231 = vld [vmem:[#allocation8 + $0x118] sm:$0xf]
        %v1232 = vld [vmem:[#allocation8 + $0x11c] sm:$0xf]
        %v1233 = vld [vmem:[#allocation8 + $0x120] sm:$0xf]
        %v1234 = vld [vmem:[#allocation8 + $0x124] sm:$0xf]
        %v1235 = vld [vmem:[#allocation8 + $0x128] sm:$0xf]
        %v1236 = vld [vmem:[#allocation8 + $0x12c] sm:$0xf]
        %v1237 = vld [vmem:[#allocation8 + $0x130] sm:$0xf]
        %v1238 = vld [vmem:[#allocation8 + $0x134] sm:$0xf]
        %v1239 = vld [vmem:[#allocation8 + $0x138] sm:$0xf]
        %v1240 = vld [vmem:[#allocation8 + $0x13c] sm:$0xf]
        %v1241 = vld [vmem:[#allocation8 + $0x140] sm:$0xf]
        %v1242 = vld [vmem:[#allocation8 + $0x144] sm:$0xf]
        %v1243 = vld [vmem:[#allocation8 + $0x148] sm:$0xf]
        %v1244 = vld [vmem:[#allocation8 + $0x14c] sm:$0xf]
        %v1245 = vld [vmem:[#allocation8 + $0x150] sm:$0xf]
        %v1246 = vld [vmem:[#allocation8 + $0x154] sm:$0xf]
        %v1247 = vld [vmem:[#allocation8 + $0x158] sm:$0xf]
        %v1248 = vld [vmem:[#allocation8 + $0x15c] sm:$0xf]
        %v1249 = vld [vmem:[#allocation8 + $0x160] sm:$0xf]
        %v1250 = vld [vmem:[#allocation8 + $0x164] sm:$0xf]
        %v1251 = vld [vmem:[#allocation8 + $0x168] sm:$0xf]
        %v1252 = vld [vmem:[#allocation8 + $0x16c] sm:$0xf]
        %v1253 = vld [vmem:[#allocation8 + $0x170] sm:$0xf]
        %v1254 = vld [vmem:[#allocation8 + $0x174] sm:$0xf]
        %v1255 = vld [vmem:[#allocation8 + $0x178] sm:$0xf]
        %v1256 = vld [vmem:[#allocation8 + $0x17c] sm:$0xf]
        %v1257 = vld [vmem:[#allocation8 + $0x180] sm:$0xf]
        %v1258 = vld [vmem:[#allocation8 + $0x184] sm:$0xf]
        %v1259 = vld [vmem:[#allocation8 + $0x188] sm:$0xf]
        %v1260 = vld [vmem:[#allocation8 + $0x18c] sm:$0xf]
        %v1261 = vld [vmem:[#allocation8 + $0x190] sm:$0xf]
        %v1262 = vld [vmem:[#allocation8 + $0x194] sm:$0xf]
        %v1263 = vld [vmem:[#allocation8 + $0x198] sm:$0xf]
        %v1264 = vld [vmem:[#allocation8 + $0x19c] sm:$0xf]
        %v1265 = vld [vmem:[#allocation8 + $0x1a0] sm:$0xf]
        %v1266 = vld [vmem:[#allocation8 + $0x1a4] sm:$0xf]
        %v1267 = vld [vmem:[#allocation8 + $0x1a8] sm:$0xf]
        %v1268 = vld [vmem:[#allocation8 + $0x1ac] sm:$0xf]
        %v1269 = vld [vmem:[#allocation8 + $0x1b0] sm:$0xf]
        %v1270 = vld [vmem:[#allocation8 + $0x1b4] sm:$0xf]
        %v1271 = vld [vmem:[#allocation8 + $0x1b8] sm:$0xf]
        %v1272 = vld [vmem:[#allocation8 + $0x1bc] sm:$0xf]
        %v1273 = vld [vmem:[#allocation8 + $0x1c0] sm:$0xf]
        %v1274 = vld [vmem:[#allocation8 + $0x1c4] sm:$0xf]
        %v1275 = vld [vmem:[#allocation8 + $0x1c8] sm:$0xf]
        %v1276 = vld [vmem:[#allocation8 + $0x1cc] sm:$0xf]
        %v1277 = vld [vmem:[#allocation8 + $0x1d0] sm:$0xf]
        %v1278 = vld [vmem:[#allocation8 + $0x1d4] sm:$0xf]
        %v1279 = vld [vmem:[#allocation8 + $0x1d8] sm:$0xf]
        %v1280 = vld [vmem:[#allocation8 + $0x1dc] sm:$0xf]
        %v1281 = vld [vmem:[#allocation8 + $0x1e0] sm:$0xf]
        %v1282 = vld [vmem:[#allocation8 + $0x1e4] sm:$0xf]
        %v1283 = vld [vmem:[#allocation8 + $0x1e8] sm:$0xf]
        %v1284 = vld [vmem:[#allocation8 + $0x1ec] sm:$0xf]
        %v1285 = vld [vmem:[#allocation8 + $0x1f0] sm:$0xf]
        %v1286 = vld [vmem:[#allocation8 + $0x1f4] sm:$0xf]
        %v1287 = vld [vmem:[#allocation8 + $0x1f8] sm:$0xf]
        %v1288 = vld [vmem:[#allocation8 + $0x1fc] sm:$0xf]
        %v1289 = vld [vmem:[#allocation8 + $0x200] sm:$0xf]
        %v1290 = vld [vmem:[#allocation8 + $0x204] sm:$0xf]
        %v1291 = vld [vmem:[#allocation8 + $0x208] sm:$0xf]
        %v1292 = vld [vmem:[#allocation8 + $0x20c] sm:$0xf]
        %v1293 = vld [vmem:[#allocation8 + $0x210] sm:$0xf]
        %v1294 = vld [vmem:[#allocation8 + $0x214] sm:$0xf]
        %v1295 = vld [vmem:[#allocation8 + $0x218] sm:$0xf]
        %v1296 = vld [vmem:[#allocation8 + $0x21c] sm:$0xf]
        %v1297 = vld [vmem:[#allocation8 + $0x220] sm:$0xf]
        %v1298 = vld [vmem:[#allocation8 + $0x224] sm:$0xf]
        %v1299 = vld [vmem:[#allocation8 + $0x228] sm:$0xf]
        %v1300 = vld [vmem:[#allocation8 + $0x22c] sm:$0xf]
        %v1301 = vld [vmem:[#allocation8 + $0x230] sm:$0xf]
        %v1302 = vld [vmem:[#allocation8 + $0x234] sm:$0xf]
        %v1303 = vld [vmem:[#allocation8 + $0x238] sm:$0xf]
        %v1304 = vld [vmem:[#allocation8 + $0x23c] sm:$0xf]
        %v1449 = vunpack.c.l.b16 %v1161
        %v1450 = vunpack.c.l.b16 %v1162
        %v1451 = vunpack.c.l.b16 %v1163
        %v1452 = vunpack.c.l.b16 %v1164
        %v1453 = vunpack.c.l.b16 %v1165
        %v1454 = vunpack.c.l.b16 %v1166
        %v1455 = vunpack.c.l.b16 %v1167
        %v1456 = vunpack.c.l.b16 %v1168
        %v1457 = vunpack.c.l.b16 %v1169
        %v1458 = vunpack.c.l.b16 %v1170
        %v1459 = vunpack.c.l.b16 %v1171
        %v1460 = vunpack.c.l.b16 %v1172
        %v1461 = vunpack.c.l.b16 %v1173
        %v1462 = vunpack.c.l.b16 %v1174
        %v1463 = vunpack.c.l.b16 %v1175
        %v1464 = vunpack.c.l.b16 %v1176
        %v1465 = vunpack.c.l.b16 %v1177
        %v1466 = vunpack.c.l.b16 %v1178
        %v1467 = vunpack.c.l.b16 %v1179
        %v1468 = vunpack.c.l.b16 %v1180
        %v1469 = vunpack.c.l.b16 %v1181
        %v1470 = vunpack.c.l.b16 %v1182
        %v1471 = vunpack.c.l.b16 %v1183
        %v1472 = vunpack.c.l.b16 %v1184
        %v1473 = vunpack.c.l.b16 %v1185
        %v1474 = vunpack.c.l.b16 %v1186
        %v1475 = vunpack.c.l.b16 %v1187
        %v1476 = vunpack.c.l.b16 %v1188
        %v1477 = vunpack.c.l.b16 %v1189
        %v1478 = vunpack.c.l.b16 %v1190
        %v1479 = vunpack.c.l.b16 %v1191
        %v1480 = vunpack.c.l.b16 %v1192
        %v1481 = vunpack.c.l.b16 %v1193
        %v1482 = vunpack.c.l.b16 %v1194
        %v1483 = vunpack.c.l.b16 %v1195
        %v1484 = vunpack.c.l.b16 %v1196
        %v1485 = vunpack.c.l.b16 %v1197
        %v1486 = vunpack.c.l.b16 %v1198
        %v1487 = vunpack.c.l.b16 %v1199
        %v1488 = vunpack.c.l.b16 %v1200
        %v1489 = vunpack.c.l.b16 %v1201
        %v1490 = vunpack.c.l.b16 %v1202
        %v1491 = vunpack.c.l.b16 %v1203
        %v1492 = vunpack.c.l.b16 %v1204
        %v1493 = vunpack.c.l.b16 %v1205
        %v1494 = vunpack.c.l.b16 %v1206
        %v1495 = vunpack.c.l.b16 %v1207
        %v1496 = vunpack.c.l.b16 %v1208
        %v1497 = vunpack.c.l.b16 %v1209
        %v1498 = vunpack.c.l.b16 %v1210
        %v1499 = vunpack.c.l.b16 %v1211
        %v1500 = vunpack.c.l.b16 %v1212
        %v1501 = vunpack.c.l.b16 %v1213
        %v1502 = vunpack.c.l.b16 %v1214
        %v1503 = vunpack.c.l.b16 %v1215
        %v1504 = vunpack.c.l.b16 %v1216
        %v1505 = vunpack.c.l.b16 %v1217
        %v1506 = vunpack.c.l.b16 %v1218
        %v1507 = vunpack.c.l.b16 %v1219
        %v1508 = vunpack.c.l.b16 %v1220
        %v1509 = vunpack.c.l.b16 %v1221
        %v1510 = vunpack.c.l.b16 %v1222
        %v1511 = vunpack.c.l.b16 %v1223
        %v1512 = vunpack.c.l.b16 %v1224
        %v1513 = vunpack.c.l.b16 %v1225
        %v1514 = vunpack.c.l.b16 %v1226
        %v1515 = vunpack.c.l.b16 %v1227
        %v1516 = vunpack.c.l.b16 %v1228
        %v1517 = vunpack.c.l.b16 %v1229
        %v1518 = vunpack.c.l.b16 %v1230
        %v1519 = vunpack.c.l.b16 %v1231
        %v1520 = vunpack.c.l.b16 %v1232
        %v1521 = vunpack.c.l.b16 %v1233
        %v1522 = vunpack.c.l.b16 %v1234
        %v1523 = vunpack.c.l.b16 %v1235
        %v1524 = vunpack.c.l.b16 %v1236
        %v1525 = vunpack.c.l.b16 %v1237
        %v1526 = vunpack.c.l.b16 %v1238
        %v1527 = vunpack.c.l.b16 %v1239
        %v1528 = vunpack.c.l.b16 %v1240
        %v1529 = vunpack.c.l.b16 %v1241
        %v1530 = vunpack.c.l.b16 %v1242
        %v1531 = vunpack.c.l.b16 %v1243
        %v1532 = vunpack.c.l.b16 %v1244
        %v1533 = vunpack.c.l.b16 %v1245
        %v1534 = vunpack.c.l.b16 %v1246
        %v1535 = vunpack.c.l.b16 %v1247
        %v1536 = vunpack.c.l.b16 %v1248
        %v1537 = vunpack.c.l.b16 %v1249
        %v1538 = vunpack.c.l.b16 %v1250
        %v1539 = vunpack.c.l.b16 %v1251
        %v1540 = vunpack.c.l.b16 %v1252
        %v1541 = vunpack.c.l.b16 %v1253
        %v1542 = vunpack.c.l.b16 %v1254
        %v1543 = vunpack.c.l.b16 %v1255
        %v1544 = vunpack.c.l.b16 %v1256
        %v1545 = vunpack.c.l.b16 %v1257
        %v1546 = vunpack.c.l.b16 %v1258
        %v1547 = vunpack.c.l.b16 %v1259
        %v1548 = vunpack.c.l.b16 %v1260
        %v1549 = vunpack.c.l.b16 %v1261
        %v1550 = vunpack.c.l.b16 %v1262
        %v1551 = vunpack.c.l.b16 %v1263
        %v1552 = vunpack.c.l.b16 %v1264
        %v1553 = vunpack.c.l.b16 %v1265
        %v1554 = vunpack.c.l.b16 %v1266
        %v1555 = vunpack.c.l.b16 %v1267
        %v1556 = vunpack.c.l.b16 %v1268
        %v1557 = vunpack.c.l.b16 %v1269
        %v1558 = vunpack.c.l.b16 %v1270
        %v1559 = vunpack.c.l.b16 %v1271
        %v1560 = vunpack.c.l.b16 %v1272
        %v1561 = vunpack.c.l.b16 %v1273
        %v1562 = vunpack.c.l.b16 %v1274
        %v1563 = vunpack.c.l.b16 %v1275
        %v1564 = vunpack.c.l.b16 %v1276
        %v1565 = vunpack.c.l.b16 %v1277
        %v1566 = vunpack.c.l.b16 %v1278
        %v1567 = vunpack.c.l.b16 %v1279
        %v1568 = vunpack.c.l.b16 %v1280
        %v1569 = vunpack.c.l.b16 %v1281
        %v1570 = vunpack.c.l.b16 %v1282
        %v1571 = vunpack.c.l.b16 %v1283
        %v1572 = vunpack.c.l.b16 %v1284
        %v1573 = vunpack.c.l.b16 %v1285
        %v1574 = vunpack.c.l.b16 %v1286
        %v1575 = vunpack.c.l.b16 %v1287
        %v1576 = vunpack.c.l.b16 %v1288
        %v1577 = vunpack.c.l.b16 %v1289
        %v1578 = vunpack.c.l.b16 %v1290
        %v1579 = vunpack.c.l.b16 %v1291
        %v1580 = vunpack.c.l.b16 %v1292
        %v1581 = vunpack.c.l.b16 %v1293
        %v1582 = vunpack.c.l.b16 %v1294
        %v1583 = vunpack.c.l.b16 %v1295
        %v1584 = vunpack.c.l.b16 %v1296
        %v1585 = vunpack.c.l.b16 %v1297
        %v1586 = vunpack.c.l.b16 %v1298
        %v1587 = vunpack.c.l.b16 %v1299
        %v1588 = vunpack.c.l.b16 %v1300
        %v1589 = vunpack.c.l.b16 %v1301
        %v1590 = vunpack.c.l.b16 %v1302
        %v1591 = vunpack.c.l.b16 %v1303
        %v1592 = vunpack.c.l.b16 %v1304
        %v1593 = vpack.c.b16 %v1450, %v1449
        %v1594 = vpack.c.b16 %v1452, %v1451
        %v1595 = vpack.c.b16 %v1454, %v1453
        %v1596 = vpack.c.b16 %v1456, %v1455
        %v1597 = vpack.c.b16 %v1458, %v1457
        %v1598 = vpack.c.b16 %v1460, %v1459
        %v1599 = vpack.c.b16 %v1462, %v1461
        %v1600 = vpack.c.b16 %v1464, %v1463
        %v1601 = vpack.c.b16 %v1466, %v1465
        %v1602 = vpack.c.b16 %v1468, %v1467
        %v1603 = vpack.c.b16 %v1470, %v1469
        %v1604 = vpack.c.b16 %v1472, %v1471
        %v1605 = vpack.c.b16 %v1474, %v1473
        %v1606 = vpack.c.b16 %v1476, %v1475
        %v1607 = vpack.c.b16 %v1478, %v1477
        %v1608 = vpack.c.b16 %v1480, %v1479
        %v1609 = vpack.c.b16 %v1482, %v1481
        %v1610 = vpack.c.b16 %v1484, %v1483
        %v1611 = vpack.c.b16 %v1486, %v1485
        %v1612 = vpack.c.b16 %v1488, %v1487
        %v1613 = vpack.c.b16 %v1490, %v1489
        %v1614 = vpack.c.b16 %v1492, %v1491
        %v1615 = vpack.c.b16 %v1494, %v1493
        %v1616 = vpack.c.b16 %v1496, %v1495
        %v1617 = vpack.c.b16 %v1498, %v1497
        %v1618 = vpack.c.b16 %v1500, %v1499
        %v1619 = vpack.c.b16 %v1502, %v1501
        %v1620 = vpack.c.b16 %v1504, %v1503
        %v1621 = vpack.c.b16 %v1506, %v1505
        %v1622 = vpack.c.b16 %v1508, %v1507
        %v1623 = vpack.c.b16 %v1510, %v1509
        %v1624 = vpack.c.b16 %v1512, %v1511
        %v1625 = vpack.c.b16 %v1514, %v1513
        %v1626 = vpack.c.b16 %v1516, %v1515
        %v1627 = vpack.c.b16 %v1518, %v1517
        %v1628 = vpack.c.b16 %v1520, %v1519
        %v1629 = vpack.c.b16 %v1522, %v1521
        %v1630 = vpack.c.b16 %v1524, %v1523
        %v1631 = vpack.c.b16 %v1526, %v1525
        %v1632 = vpack.c.b16 %v1528, %v1527
        %v1633 = vpack.c.b16 %v1530, %v1529
        %v1634 = vpack.c.b16 %v1532, %v1531
        %v1635 = vpack.c.b16 %v1534, %v1533
        %v1636 = vpack.c.b16 %v1536, %v1535
        %v1637 = vpack.c.b16 %v1538, %v1537
        %v1638 = vpack.c.b16 %v1540, %v1539
        %v1639 = vpack.c.b16 %v1542, %v1541
        %v1640 = vpack.c.b16 %v1544, %v1543
        %v1641 = vpack.c.b16 %v1546, %v1545
        %v1642 = vpack.c.b16 %v1548, %v1547
        %v1643 = vpack.c.b16 %v1550, %v1549
        %v1644 = vpack.c.b16 %v1552, %v1551
        %v1645 = vpack.c.b16 %v1554, %v1553
        %v1646 = vpack.c.b16 %v1556, %v1555
        %v1647 = vpack.c.b16 %v1558, %v1557
        %v1648 = vpack.c.b16 %v1560, %v1559
        %v1649 = vpack.c.b16 %v1562, %v1561
        %v1650 = vpack.c.b16 %v1564, %v1563
        %v1651 = vpack.c.b16 %v1566, %v1565
        %v1652 = vpack.c.b16 %v1568, %v1567
        %v1653 = vpack.c.b16 %v1570, %v1569
        %v1654 = vpack.c.b16 %v1572, %v1571
        %v1655 = vpack.c.b16 %v1574, %v1573
        %v1656 = vpack.c.b16 %v1576, %v1575
        %v1657 = vpack.c.b16 %v1578, %v1577
        %v1658 = vpack.c.b16 %v1580, %v1579
        %v1659 = vpack.c.b16 %v1582, %v1581
        %v1660 = vpack.c.b16 %v1584, %v1583
        %v1661 = vpack.c.b16 %v1586, %v1585
        %v1662 = vpack.c.b16 %v1588, %v1587
        %v1663 = vpack.c.b16 %v1590, %v1589
        %v1664 = vpack.c.b16 %v1592, %v1591
        %1737 = vmatprep.subr.bf16.mxu0 0
        %1738 = vmatpush1.bf16.msra.mxu0 %v1593
        %1739 = vmatprep.subr.bf16.mxu0 0
        %1740 = vmatpush1.bf16.msra.mxu0 %v1594
        %1741 = vmatprep.subr.bf16.mxu0 0
        %1742 = vmatpush1.bf16.msra.mxu0 %v1595
        %1743 = vmatprep.subr.bf16.mxu0 0
        %1744 = vmatpush1.bf16.msra.mxu0 %v1596
        %1745 = vmatprep.subr.bf16.mxu0 0
        %1746 = vmatpush1.bf16.msra.mxu0 %v1597
        %1747 = vmatprep.subr.bf16.mxu0 0
        %1748 = vmatpush1.bf16.msra.mxu0 %v1598
        %1749 = vmatprep.subr.bf16.mxu0 0
        %1750 = vmatpush1.bf16.msra.mxu0 %v1599
        %1751 = vmatprep.subr.bf16.mxu0 0
        %1752 = vmatpush1.bf16.msra.mxu0 %v1600
        %1753 = vmatprep.subr.bf16.mxu0 0
        %1754 = vmatpush1.bf16.msra.mxu0 %v1601
        %1755 = vmatprep.subr.bf16.mxu0 0
        %1756 = vmatpush1.bf16.msra.mxu0 %v1602
        %1757 = vmatprep.subr.bf16.mxu0 0
        %1758 = vmatpush1.bf16.msra.mxu0 %v1603
        %1759 = vmatprep.subr.bf16.mxu0 0
        %1760 = vmatpush1.bf16.msra.mxu0 %v1604
        %1761 = vmatprep.subr.bf16.mxu0 0
        %1762 = vmatpush1.bf16.msra.mxu0 %v1605
        %1763 = vmatprep.subr.bf16.mxu0 0
        %1764 = vmatpush1.bf16.msra.mxu0 %v1606
        %1765 = vmatprep.subr.bf16.mxu0 0
        %1766 = vmatpush1.bf16.msra.mxu0 %v1607
        %1767 = vmatprep.subr.bf16.mxu0 0
        %1768 = vmatpush1.bf16.msra.mxu0 %v1608
        %1769 = vmatprep.mubr.bf16.mxu0 %v1096
        %1770 = vmatmul.mubr.bf16.gmra.mrb[0].mxu0 %v1095
        %v1771 = vpop.f32.mrb[0].mxu0
        %v1772 = vadd.f32 0.0, %v1771
        %v1773 = vpop.f32.mrb[0].mxu0
        %v1774 = vpop.f32.mrb[0].mxu0
        %v1775 = vadd.f32 0.0, %v1774
        %v1776 = vpop.f32.mrb[0].mxu0
        %1777 = vdwg.mxu0
        %1778 = vmatprep.subr.bf16.mxu0 0
        %1779 = vmatpush1.bf16.msra.mxu0 %v1609
        %1780 = vmatprep.subr.bf16.mxu0 0
        %1781 = vmatpush1.bf16.msra.mxu0 %v1610
        %1782 = vmatprep.subr.bf16.mxu0 0
        %1783 = vmatpush1.bf16.msra.mxu0 %v1611
        %1784 = vmatprep.subr.bf16.mxu0 0
        %1785 = vmatpush1.bf16.msra.mxu0 %v1612
        %1786 = vmatprep.subr.bf16.mxu0 0
        %1787 = vmatpush1.bf16.msra.mxu0 %v1613
        %1788 = vmatprep.subr.bf16.mxu0 0
        %1789 = vmatpush1.bf16.msra.mxu0 %v1614
        %1790 = vmatprep.subr.bf16.mxu0 0
        %1791 = vmatpush1.bf16.msra.mxu0 %v1615
        %1792 = vmatprep.subr.bf16.mxu0 0
        %1793 = vmatpush1.bf16.msra.mxu0 %v1616
        %1794 = vmatprep.subr.bf16.mxu0 0
        %1795 = vmatpush1.bf16.msra.mxu0 %v1617
        %1796 = vmatprep.subr.bf16.mxu0 0
        %1797 = vmatpush1.bf16.msra.mxu0 %v1618
        %1798 = vmatprep.subr.bf16.mxu0 0
        %1799 = vmatpush1.bf16.msra.mxu0 %v1619
        %1800 = vmatprep.subr.bf16.mxu0 0
        %1801 = vmatpush1.bf16.msra.mxu0 %v1620
        %1802 = vmatprep.subr.bf16.mxu0 0
        %1803 = vmatpush1.bf16.msra.mxu0 %v1621
        %1804 = vmatprep.subr.bf16.mxu0 0
        %1805 = vmatpush1.bf16.msra.mxu0 %v1622
        %1806 = vmatprep.subr.bf16.mxu0 0
        %1807 = vmatpush1.bf16.msra.mxu0 %v1623
        %1808 = vmatprep.subr.bf16.mxu0 0
        %1809 = vmatpush1.bf16.msra.mxu0 %v1624
        %1810 = vmatprep.mubr.bf16.mxu0 %v1098
        %1811 = vmatmul.mubr.bf16.gmra.mrb[0].mxu0 %v1097
        %v1812 = vpop.f32.mrb[0].mxu0
        %v1813 = vadd.f32 %v1772, %v1812
        %v1814 = vpop.f32.mrb[0].mxu0
        %v1815 = vpop.f32.mrb[0].mxu0
        %v1816 = vadd.f32 %v1775, %v1815
        %v1817 = vpop.f32.mrb[0].mxu0
        %1818 = vdwg.mxu0
        %1819 = vmatprep.subr.bf16.mxu0 0
        %1820 = vmatpush1.bf16.msra.mxu0 %v1625
        %1821 = vmatprep.subr.bf16.mxu0 0
        %1822 = vmatpush1.bf16.msra.mxu0 %v1626
        %1823 = vmatprep.subr.bf16.mxu0 0
        %1824 = vmatpush1.bf16.msra.mxu0 %v1627
        %1825 = vmatprep.subr.bf16.mxu0 0
        %1826 = vmatpush1.bf16.msra.mxu0 %v1628
        %1827 = vmatprep.subr.bf16.mxu0 0
        %1828 = vmatpush1.bf16.msra.mxu0 %v1629
        %1829 = vmatprep.subr.bf16.mxu0 0
        %1830 = vmatpush1.bf16.msra.mxu0 %v1630
        %1831 = vmatprep.subr.bf16.mxu0 0
        %1832 = vmatpush1.bf16.msra.mxu0 %v1631
        %1833 = vmatprep.subr.bf16.mxu0 0
        %1834 = vmatpush1.bf16.msra.mxu0 %v1632
        %1835 = vmatprep.subr.bf16.mxu0 0
        %1836 = vmatpush1.bf16.msra.mxu0 %v1633
        %1837 = vmatprep.subr.bf16.mxu0 0
        %1838 = vmatpush1.bf16.msra.mxu0 %v1634
        %1839 = vmatprep.subr.bf16.mxu0 0
        %1840 = vmatpush1.bf16.msra.mxu0 %v1635
        %1841 = vmatprep.subr.bf16.mxu0 0
        %1842 = vmatpush1.bf16.msra.mxu0 %v1636
        %1843 = vmatprep.subr.bf16.mxu0 0
        %1844 = vmatpush1.bf16.msra.mxu0 %v1637
        %1845 = vmatprep.subr.bf16.mxu0 0
        %1846 = vmatpush1.bf16.msra.mxu0 %v1638
        %1847 = vmatprep.subr.bf16.mxu0 0
        %1848 = vmatpush1.bf16.msra.mxu0 %v1639
        %1849 = vmatprep.subr.bf16.mxu0 0
        %1850 = vmatpush1.bf16.msra.mxu0 %v1640
        %1851 = vmatprep.mubr.bf16.mxu0 %v1100
        %1852 = vmatmul.mubr.bf16.gmra.mrb[0].mxu0 %v1099
        %v1853 = vpop.f32.mrb[0].mxu0
        %v1854 = vadd.f32 %v1813, %v1853
        %v1855 = vpop.f32.mrb[0].mxu0
        %v1856 = vpop.f32.mrb[0].mxu0
        %v1857 = vadd.f32 %v1816, %v1856
        %v1858 = vpop.f32.mrb[0].mxu0
        %1859 = vdwg.mxu0
        %1860 = vmatprep.subr.bf16.mxu0 0
        %1861 = vmatpush1.bf16.msra.mxu0 %v1641
        %1862 = vmatprep.subr.bf16.mxu0 0
        %1863 = vmatpush1.bf16.msra.mxu0 %v1642
        %1864 = vmatprep.subr.bf16.mxu0 0
        %1865 = vmatpush1.bf16.msra.mxu0 %v1643
        %1866 = vmatprep.subr.bf16.mxu0 0
        %1867 = vmatpush1.bf16.msra.mxu0 %v1644
        %1868 = vmatprep.subr.bf16.mxu0 0
        %1869 = vmatpush1.bf16.msra.mxu0 %v1645
        %1870 = vmatprep.subr.bf16.mxu0 0
        %1871 = vmatpush1.bf16.msra.mxu0 %v1646
        %1872 = vmatprep.subr.bf16.mxu0 0
        %1873 = vmatpush1.bf16.msra.mxu0 %v1647
        %1874 = vmatprep.subr.bf16.mxu0 0
        %1875 = vmatpush1.bf16.msra.mxu0 %v1648
        %1876 = vmatprep.subr.bf16.mxu0 0
        %1877 = vmatpush1.bf16.msra.mxu0 %v1649
        %1878 = vmatprep.subr.bf16.mxu0 0
        %1879 = vmatpush1.bf16.msra.mxu0 %v1650
        %1880 = vmatprep.subr.bf16.mxu0 0
        %1881 = vmatpush1.bf16.msra.mxu0 %v1651
        %1882 = vmatprep.subr.bf16.mxu0 0
        %1883 = vmatpush1.bf16.msra.mxu0 %v1652
        %1884 = vmatprep.subr.bf16.mxu0 0
        %1885 = vmatpush1.bf16.msra.mxu0 %v1653
        %1886 = vmatprep.subr.bf16.mxu0 0
        %1887 = vmatpush1.bf16.msra.mxu0 %v1654
        %1888 = vmatprep.subr.bf16.mxu0 0
        %1889 = vmatpush1.bf16.msra.mxu0 %v1655
        %1890 = vmatprep.subr.bf16.mxu0 0
        %1891 = vmatpush1.bf16.msra.mxu0 %v1656
        %1892 = vmatprep.mubr.bf16.mxu0 %v1102
        %1893 = vmatmul.mubr.bf16.gmra.mrb[0].mxu0 %v1101
        %v1894 = vpop.f32.mrb[0].mxu0
        %v1895 = vadd.f32 %v1854, %v1894
        %v1896 = vpop.f32.mrb[0].mxu0
        %v1897 = vpop.f32.mrb[0].mxu0
        %v1898 = vadd.f32 %v1857, %v1897
        %v1899 = vpop.f32.mrb[0].mxu0
        %1900 = vdwg.mxu0
        %1901 = vmatprep.subr.bf16.mxu0 0
        %1902 = vmatpush1.bf16.msra.mxu0 %v1657
        %1903 = vmatprep.subr.bf16.mxu0 0
        %1904 = vmatpush1.bf16.msra.mxu0 %v1658
        %1905 = vmatprep.subr.bf16.mxu0 0
        %1906 = vmatpush1.bf16.msra.mxu0 %v1659
        %1907 = vmatprep.subr.bf16.mxu0 0
        %1908 = vmatpush1.bf16.msra.mxu0 %v1660
        %1909 = vmatprep.subr.bf16.mxu0 0
        %1910 = vmatpush1.bf16.msra.mxu0 %v1661
        %1911 = vmatprep.subr.bf16.mxu0 0
        %1912 = vmatpush1.bf16.msra.mxu0 %v1662
        %1913 = vmatprep.subr.bf16.mxu0 0
        %1914 = vmatpush1.bf16.msra.mxu0 %v1663
        %1915 = vmatprep.subr.bf16.mxu0 0
        %1916 = vmatpush1.bf16.msra.mxu0 %v1664
        %1917 = vmatprep.subr.bf16.mxu0 0
        %1918 = vmatpush1.bf16.msra.mxu0 0
        %1919 = vmatprep.subr.bf16.mxu0 0
        %1920 = vmatpush1.bf16.msra.mxu0 0
        %1921 = vmatprep.subr.bf16.mxu0 0
        %1922 = vmatpush1.bf16.msra.mxu0 0
        %1923 = vmatprep.subr.bf16.mxu0 0
        %1924 = vmatpush1.bf16.msra.mxu0 0
        %1925 = vmatprep.subr.bf16.mxu0 0
        %1926 = vmatpush1.bf16.msra.mxu0 0
        %1927 = vmatprep.subr.bf16.mxu0 0
        %1928 = vmatpush1.bf16.msra.mxu0 0
        %1929 = vmatprep.subr.bf16.mxu0 0
        %1930 = vmatpush1.bf16.msra.mxu0 0
        %1931 = vmatprep.subr.bf16.mxu0 0
        %1932 = vmatpush1.bf16.msra.mxu0 0
        %1933 = vmatprep.mubr.bf16.mxu0 0
        %1934 = vmatmul.mubr.bf16.gmra.mrb[0].mxu0 %v1103
        %v1935 = vpop.f32.mrb[0].mxu0
        %v1936 = vadd.f32 %v1895, %v1935
        %v1937 = vpop.f32.mrb[0].mxu0
        %v1938 = vpop.f32.mrb[0].mxu0
        %v1939 = vadd.f32 %v1898, %v1938
        %v1940 = vpop.f32.mrb[0].mxu0
        %1941 = vdwg.mxu0
        %v1942 = vpack.c.bf16 %v1939, %v1936
        %v1944 = vunpack.c.l.b16 %v1942
        %v1945 = vunpack.c.h.b16 %v1942
        %v1946 = vpack.c.b16 %v1944, %v1944
        %v1947 = vpack.c.b16 %v1945, %v1945
        %1950 = vst [vmem:[%s296] sm:$0xf] %v1946
        %1951 = vst [vmem:[%s296 + $0x4] sm:$0xf] %v1947
        %s1952 = sand.u32 %s125, 1
        %s1953 = scalar_lea.sflag [#allocation4], %s1952
        %s1954 = sand.u32 %s125, 1
        %s1955 = smul.addr %s1954, 72
        %s1956 = scalar_lea.vmem [#allocation10], %s1955
        %s1957 = sand.u32 %s151, 1
        %s1958 = scalar_lea.sflag [#allocation12], %s1957
        %s1959 = sand.u32 %s151, 1
        %s1960 = smul.addr %s1959, 8
        %s1961 = scalar_lea.vmem [#allocation11], %s1960
        // Predicated region
        $region53: #{tpu_custom_call.1} parent=35 // pred_check
          %p1962 = pneg %p135
        $region54: #{tpu_custom_call.1} parent=35 // pred_check_branch
          %1964 = sbr.rel (%p1962) target = $region56
        $region55: #{tpu_custom_call.1} parent=35 // pred_region
          %s1965 = smul.u32 2, %s28
          %s1967 = ssub.s32 1152, 1152
          %1968 = vsyncadd %s1953, %s1967
          %s1969 = smul.addr %s1965, 9
          %s1970 = smul.addr %s1969, 64
          %s1971 = scalar_lea.hbm %s4, %s1970
          %s1972 = sshll.u32 %s1956, 4
          %s1973 = int_to_ptr.vmem [resolvable:$true] %s1972
          %1978 = dma.vmem_to_hbm [thread:$0]  %s1973, 1152, %s1971, %s1953, 576, 576, 36
        $region56: #{tpu_custom_call.1} parent=35 // pred_fallthru
          _
        // Predicated region
        $region57: #{tpu_custom_call.1} parent=35 // pred_check
          %p1979 = pneg %p161
        $region58: #{tpu_custom_call.1} parent=35 // pred_check_branch
          %1981 = sbr.rel (%p1979) target = $region60
        $region59: #{tpu_custom_call.1} parent=35 // pred_region
          %s1982 = smul.u32 2, %s28
          %s1984 = ssub.s32 128, 128
          %1985 = vsyncadd %s1958, %s1984
          %s1986 = smul.addr %s1982, 64
          %s1987 = scalar_lea.hbm %s5, %s1986
          %s1988 = sshll.u32 %s1961, 4
          %s1989 = int_to_ptr.vmem [resolvable:$true] %s1988
          %1994 = dma.vmem_to_hbm [thread:$0]  %s1989, 128, %s1987, %s1958, 64, 64, 4
        $region60: #{tpu_custom_call.1} parent=35 // pred_fallthru
          _
      $region36: #{tpu_custom_call.1} parent=5 // pred_fallthru
        _
      %p1995 = scmp.le.s32.totalorder 2, %s23
      // Predicated region
      $region61: #{tpu_custom_call.1} parent=5 // pred_check
        %p1996 = pneg %p1995
      $region62: #{tpu_custom_call.1} parent=5 // pred_check_branch
        %1998 = sbr.rel (%p1996) target = $region64
      $region63: #{tpu_custom_call.1} parent=5 // pred_region
        %s1999 = ssub.s32 %s23, 2
        // Predicated region
        $region65: #{tpu_custom_call.1} parent=63 // pred_check
          %p2000 = pneg %p141
        $region66: #{tpu_custom_call.1} parent=63 // pred_check_branch
          %2002 = sbr.rel (%p2000) target = $region68
        $region67: #{tpu_custom_call.1} parent=63 // pred_region
          %s2003 = sand.u32 %s126, 1
          %s2004 = scalar_lea.sflag [#allocation4], %s2003
          %s2005 = sand.u32 %s126, 1
          %s2006 = smul.addr %s2005, 72
          %s2007 = scalar_lea.vmem [#allocation10], %s2006
          %2008 = dma.done %s2004, 1152
        $region68: #{tpu_custom_call.1} parent=63 // pred_fallthru
          _
        // Predicated region
        $region69: #{tpu_custom_call.1} parent=63 // pred_check
          %p2009 = pneg %p167
        $region70: #{tpu_custom_call.1} parent=63 // pred_check_branch
          %2011 = sbr.rel (%p2009) target = $region72
        $region71: #{tpu_custom_call.1} parent=63 // pred_region
          %s2012 = sand.u32 %s152, 1
          %s2013 = scalar_lea.sflag [#allocation12], %s2012
          %s2014 = sand.u32 %s152, 1
          %s2015 = smul.addr %s2014, 8
          %s2016 = scalar_lea.vmem [#allocation11], %s2015
          %2017 = dma.done %s2013, 128
        $region72: #{tpu_custom_call.1} parent=63 // pred_fallthru
          _
      $region64: #{tpu_custom_call.1} parent=5 // pred_fallthru
        _
    $region6: #{tpu_custom_call.1} parent=1 // loop_footer
      %s27 = sadd.s32 1, %s23
    $region7: #{tpu_custom_call.1} parent=1 // loop_footer_branch
      %22 = sbr.rel target = $region3
    $region8: #{tpu_custom_call.1} parent=1 // loop_exit
      _
    %2018 = vsyncpa [#allocation3], 1
    %s2019 = scalar_lea.sflag [#allocation3], 1
    %2020 = vsyncpa %s2019, 1
    %2021 = vsyncpa [#allocation6], 1
    %2022 = vsyncpa [#allocation9], 1
    %2023 = vsyncpa [#allocation4], 1
    %s2024 = scalar_lea.sflag [#allocation4], 1
    %2025 = vsyncpa %s2024, 1
    %2026 = vsyncpa [#allocation12], 1
    %s2027 = scalar_lea.sflag [#allocation12], 1
    %2028 = vsyncpa %s2027, 1

</llo_original>
